<compile_context>
chip_gen: v5e
topology: v5e:2x2
jax: 0.10.0
libtpu: 0.0.40
codegen_flags: <defaults>
</compile_context>

<pallas_src>
import jax
import jax.numpy as jnp
from jax import lax
from jax.experimental import pallas as pl
from jax.experimental.pallas import tpu as pltpu


# ----------------------------- Pallas kernel ---------------------------------
def _lstm_kernel(x_ref, h0_ref, c0_ref, wih_ref, whh_ref, b_ref,
                 y_ref, hn_ref, cn_ref):
    """Single-invocation LSTM, whole sequence resident in VMEM.

    x_ref   : (B, S, E)    batch-major input
    h0_ref  : (1, B, H)    initial hidden state
    c0_ref  : (1, B, H)    initial cell state
    wih_ref : (E, 4H)      pre-transposed input weights  (g columns pre-scaled x2)
    whh_ref : (H, 4H)      pre-transposed recurrent weights (g columns pre-scaled x2)
    b_ref   : (1, 4H)      combined bias b_ih + b_hh       (g slice pre-scaled x2)
    y_ref   : (B, S*H)     lane-dense batch-major outputs
    hn_ref  : (1, B, H)    final hidden state
    cn_ref  : (1, B, H)    final cell state
    """
    B, S, E = x_ref.shape
    H = h0_ref.shape[-1]

    # ---- Prologue: hoisted input projection for every timestep (one MXU op). ----
    x_flat = x_ref[...].reshape(B * S, E)                               # (B*S, E)
    xp = jnp.dot(x_flat, wih_ref[...],
                 preferred_element_type=jnp.float32) + b_ref[...]       # (B*S, 4H)
    xp = xp.reshape(B, S, 4 * H)          # stays in vregs; no scratch round-trip

    whh = whh_ref[...]                    # (H, 4H); loaded once, reused every step

    h = h0_ref[0]                         # (B, H)
    c = c0_ref[0]                         # (B, H)

    # ---- Recurrence: static unroll (S=8) -> static slice offsets everywhere. ----
    for t in range(S):
        gates = xp[:, t, :] + jnp.dot(h, whh,
                                      preferred_element_type=jnp.float32)  # (B, 4H)
        sig = jax.nn.sigmoid(gates)       # ONE EUP pass over the full (B,4H) vreg
        i_g = sig[:, 0 * H:1 * H]
        f_g = sig[:, 1 * H:2 * H]
        g_g = 2.0 * sig[:, 2 * H:3 * H] - 1.0   # tanh(z_g): g cols pre-scaled by 2
        o_g = sig[:, 3 * H:4 * H]
        c = f_g * c + i_g * g_g
        h = o_g * jnp.tanh(c)             # second (and last) EUP push of the step
        # Lane-dense store at a static lane offset; whole output block is one
        # dense (B, S*H) slab for HBM writeback.
        y_ref[:, t * H:(t + 1) * H] = h.astype(y_ref.dtype)

    # ---- Epilogue: final states written once, unconditionally. ----
    hn_ref[0] = h.astype(hn_ref.dtype)
    cn_ref[0] = c.astype(cn_ref.dtype)


def lstm_pallas(x_bm, h0, c0, w_ih, w_hh, b_ih, b_hh):
    """x_bm: (batch, seq, n_embed) batch-major.  Returns (outputs_bm, h_n, c_n)."""
    B, S, E = x_bm.shape
    H4 = w_ih.shape[0]
    H = H4 // 4
    assert h0.shape == (1, B, H) and c0.shape == (1, B, H), (
        "single-layer unidirectional LSTM only")

    # Pre-transpose weights once (no in-kernel XLU transpose) and pre-scale the
    # g-gate columns by 2 so the kernel can recover tanh(z_g) = 2*sigmoid(2*z_g)-1
    # from the single sigmoid pass.
    gate_scale = jnp.concatenate([
        jnp.ones((2 * H,), jnp.float32),
        jnp.full((H,), 2.0, jnp.float32),
        jnp.ones((H,), jnp.float32),
    ])
    wih_t = w_ih.T.astype(jnp.float32) * gate_scale[None, :]            # (E, 4H)
    whh_t = w_hh.T.astype(jnp.float32) * gate_scale[None, :]            # (H, 4H)
    bias = ((b_ih + b_hh).astype(jnp.float32) * gate_scale).reshape(1, 4 * H)

    out_shapes = (
        jax.ShapeDtypeStruct((B, S * H), jnp.float32),   # lane-dense outputs
        jax.ShapeDtypeStruct((1, B, H), jnp.float32),    # h_n
        jax.ShapeDtypeStruct((1, B, H), jnp.float32),    # c_n
    )

    vmem = pltpu.MemorySpace.VMEM
    y_flat, h_n, c_n = pl.pallas_call(
        _lstm_kernel,
        out_shape=out_shapes,
        in_specs=[pl.BlockSpec(memory_space=vmem)] * 6,   # whole arrays in VMEM
        out_specs=(pl.BlockSpec(memory_space=vmem),
                   pl.BlockSpec(memory_space=vmem),
                   pl.BlockSpec(memory_space=vmem)),
    )(x_bm.astype(jnp.float32), h0.astype(jnp.float32), c0.astype(jnp.float32),
      wih_t, whh_t, bias)

    # Contiguous row-major reshape (free in XLA; no transpose).
    return y_flat.reshape(B, S, H), h_n, c_n


# ------------------------------ Encoder wrapper -------------------------------
def encoder_forward(embedded_inputs, hidden, params):
    """Mirrors Encoder.forward.

    embedded_inputs: (batch, seq, n_embed)   [batch-major, like the PyTorch call]
    hidden: (h0, c0), each (n_layer=1, batch, n_hidden)
    returns: (outputs (batch, seq, n_hidden), (h_n, c_n))

    The PyTorch permute(1,0,2) / permute back are folded into the kernel (it
    consumes batch-major input and emits batch-major output), so no transpose
    ops are emitted here.
    """
    h0, c0 = hidden
    outputs, h_n, c_n = lstm_pallas(embedded_inputs, h0, c0,
                                    params["w_ih"], params["w_hh"],
                                    params["b_ih"], params["b_hh"])
    return outputs, (h_n, c_n)


def init_hidden(batch_size, n_layer, n_hidden):
    h0 = jnp.zeros((n_layer, batch_size, n_hidden), jnp.float32)
    c0 = jnp.zeros((n_layer, batch_size, n_hidden), jnp.float32)
    return h0, c0


# ------------------------------ pure-JAX reference ----------------------------
def lstm_ref(x_tm, h0, c0, w_ih, w_hh, b_ih, b_hh):
    H = w_hh.shape[1]

    def step(carry, x_t):
        h, c = carry
        gates = x_t @ w_ih.T + h @ w_hh.T + b_ih + b_hh
        i = jax.nn.sigmoid(gates[:, 0 * H:1 * H])
        f = jax.nn.sigmoid(gates[:, 1 * H:2 * H])
        g = jnp.tanh(gates[:, 2 * H:3 * H])
        o = jax.nn.sigmoid(gates[:, 3 * H:4 * H])
        c = f * c + i * g
        h = o * jnp.tanh(c)
        return (h, c), h

    (hN, cN), ys = lax.scan(step, (h0[0], c0[0]), x_tm)
    return ys, hN[None], cN[None]


# ----------------------------------- main --------------------------------------
if __name__ == "__main__":
    # args: n_embed=32, n_hidden=32, n_layer=1, bidirectional=False, dropout=0.0
    B, S, E, H, L = 2, 8, 32, 32, 1

    key = jax.random.PRNGKey(0)
    k_x, k1, k2, k3, k4 = jax.random.split(key, 5)

    # Deterministic param init (PyTorch LSTM: U(-1/sqrt(H), 1/sqrt(H))).
    bound = 1.0 / jnp.sqrt(jnp.float32(H))
    params = {
        "w_ih": jax.random.uniform(k1, (4 * H, E), jnp.float32, -bound, bound),
        "w_hh": jax.random.uniform(k2, (4 * H, H), jnp.float32, -bound, bound),
        "b_ih": jax.random.uniform(k3, (4 * H,), jnp.float32, -bound, bound),
        "b_hh": jax.random.uniform(k4, (4 * H,), jnp.float32, -bound, bound),
    }

    embedded_inputs = jax.random.normal(k_x, (B, S, E), jnp.float32)
    hidden = init_hidden(B, L, H)

    outputs, (h_n, c_n) = encoder_forward(embedded_inputs, hidden, params)
    outputs = jax.block_until_ready(outputs)
    h_n = jax.block_until_ready(h_n)
    c_n = jax.block_until_ready(c_n)

    # Sanity check vs pure-JAX reference (time-major scan, then back to batch-major).
    x_tm = jnp.transpose(embedded_inputs, (1, 0, 2))
    y_ref, h_ref, c_ref = lstm_ref(x_tm, hidden[0], hidden[1],
                                   params["w_ih"], params["w_hh"],
                                   params["b_ih"], params["b_hh"])
    out_ref = jnp.transpose(y_ref, (1, 0, 2))

    assert outputs.shape == (B, S, H)
    assert h_n.shape == (L, B, H) and c_n.shape == (L, B, H)
    assert jnp.allclose(outputs, out_ref, atol=1e-5, rtol=1e-5)
    assert jnp.allclose(h_n, h_ref, atol=1e-5, rtol=1e-5)
    assert jnp.allclose(c_n, c_ref, atol=1e-5, rtol=1e-5)

    print("KERNEL_OK")
</pallas_src>

<mosaic_0001>
module attributes {stable_mosaic.version = 11 : i64} {
  func.func @_lstm_kernel(%arg0: memref<2x8x32xf32, #tpu.memory_space<vmem>>, %arg1: memref<1x2x32xf32, #tpu.memory_space<vmem>>, %arg2: memref<1x2x32xf32, #tpu.memory_space<vmem>>, %arg3: memref<32x128xf32, #tpu.memory_space<vmem>>, %arg4: memref<32x128xf32, #tpu.memory_space<vmem>>, %arg5: memref<1x128xf32, #tpu.memory_space<vmem>>, %arg6: memref<2x256xf32, #tpu.memory_space<vmem>>, %arg7: memref<1x2x32xf32, #tpu.memory_space<vmem>>, %arg8: memref<1x2x32xf32, #tpu.memory_space<vmem>>) attributes {dimension_semantics = [], scalar_prefetch = 0 : i64, scratch_operands = 0 : i64, tpu.core_type = #tpu.core_type<tc>} {
    %c0 = arith.constant 0 : index
    %c0_0 = arith.constant 0 : index
    %c0_1 = arith.constant 0 : index
    %0 = vector.load %arg0[%c0, %c0_0, %c0_1] : memref<2x8x32xf32, #tpu.memory_space<vmem>>, vector<2x8x32xf32>
    %1 = vector.shape_cast %0 : vector<2x8x32xf32> to vector<16x32xf32>
    %c0_2 = arith.constant 0 : index
    %c0_3 = arith.constant 0 : index
    %2 = vector.load %arg3[%c0_2, %c0_3] : memref<32x128xf32, #tpu.memory_space<vmem>>, vector<32x128xf32>
    %cst = arith.constant dense<0.000000e+00> : vector<16x128xf32>
    %3 = tpu.matmul %1, %2, %cst {dimension_numbers = #tpu.dot_dimension_numbers<[1], [0], [0], [1], [0, 0, 1, 1], [], []>} : vector<16x32xf32>, vector<32x128xf32>, vector<16x128xf32> -> vector<16x128xf32>
    %c0_4 = arith.constant 0 : index
    %c0_5 = arith.constant 0 : index
    %4 = vector.load %arg5[%c0_4, %c0_5] : memref<1x128xf32, #tpu.memory_space<vmem>>, vector<1x128xf32>
    %5 = vector.broadcast %4 : vector<1x128xf32> to vector<16x128xf32>
    %6 = arith.addf %3, %5 : vector<16x128xf32>
    %7 = vector.shape_cast %6 : vector<16x128xf32> to vector<2x8x128xf32>
    %c0_6 = arith.constant 0 : index
    %c0_7 = arith.constant 0 : index
    %8 = vector.load %arg4[%c0_6, %c0_7] : memref<32x128xf32, #tpu.memory_space<vmem>>, vector<32x128xf32>
    %c0_8 = arith.constant 0 : index
    %c0_9 = arith.constant 0 : index
    %c0_10 = arith.constant 0 : index
    %9 = vector.load %arg1[%c0_8, %c0_9, %c0_10] : memref<1x2x32xf32, #tpu.memory_space<vmem>>, vector<1x2x32xf32>
    %10 = vector.shape_cast %9 : vector<1x2x32xf32> to vector<2x32xf32>
    %c0_11 = arith.constant 0 : index
    %c0_12 = arith.constant 0 : index
    %c0_13 = arith.constant 0 : index
    %11 = vector.load %arg2[%c0_11, %c0_12, %c0_13] : memref<1x2x32xf32, #tpu.memory_space<vmem>>, vector<1x2x32xf32>
    %12 = vector.shape_cast %11 : vector<1x2x32xf32> to vector<2x32xf32>
    %13 = vector.extract_strided_slice %7 {offsets = [0, 0, 0], sizes = [2, 1, 128], strides = [1, 1, 1]} : vector<2x8x128xf32> to vector<2x1x128xf32>
    %14 = vector.shape_cast %13 : vector<2x1x128xf32> to vector<2x128xf32>
    %cst_14 = arith.constant dense<0.000000e+00> : vector<2x128xf32>
    %15 = tpu.matmul %10, %8, %cst_14 {dimension_numbers = #tpu.dot_dimension_numbers<[1], [0], [0], [1], [0, 0, 1, 1], [], []>} : vector<2x32xf32>, vector<32x128xf32>, vector<2x128xf32> -> vector<2x128xf32>
    %16 = arith.addf %14, %15 : vector<2x128xf32>
    %17 = arith.negf %16 : vector<2x128xf32>
    %18 = math.exp %17 : vector<2x128xf32>
    %cst_15 = arith.constant 1.000000e+00 : f32
    %19 = vector.broadcast %cst_15 : f32 to vector<2x128xf32>
    %20 = arith.addf %19, %18 : vector<2x128xf32>
    %21 = arith.divf %19, %20 : vector<2x128xf32>
    %22 = vector.extract_strided_slice %21 {offsets = [0, 0], sizes = [2, 32], strides = [1, 1]} : vector<2x128xf32> to vector<2x32xf32>
    %23 = vector.extract_strided_slice %21 {offsets = [0, 32], sizes = [2, 32], strides = [1, 1]} : vector<2x128xf32> to vector<2x32xf32>
    %24 = vector.extract_strided_slice %21 {offsets = [0, 64], sizes = [2, 32], strides = [1, 1]} : vector<2x128xf32> to vector<2x32xf32>
    %cst_16 = arith.constant 2.000000e+00 : f32
    %25 = vector.broadcast %cst_16 : f32 to vector<2x32xf32>
    %26 = arith.mulf %25, %24 : vector<2x32xf32>
    %cst_17 = arith.constant 1.000000e+00 : f32
    %27 = vector.broadcast %cst_17 : f32 to vector<2x32xf32>
    %28 = arith.subf %26, %27 : vector<2x32xf32>
    %29 = vector.extract_strided_slice %21 {offsets = [0, 96], sizes = [2, 32], strides = [1, 1]} : vector<2x128xf32> to vector<2x32xf32>
    %30 = arith.mulf %23, %12 : vector<2x32xf32>
    %31 = arith.mulf %22, %28 : vector<2x32xf32>
    %32 = arith.addf %30, %31 : vector<2x32xf32>
    %33 = math.tanh %32 : vector<2x32xf32>
    %34 = arith.mulf %29, %33 : vector<2x32xf32>
    %c0_18 = arith.constant 0 : index
    %c0_19 = arith.constant 0 : index
    %35 = vector.load %arg6[%c0_18, %c0_19] : memref<2x256xf32, #tpu.memory_space<vmem>>, vector<2x32xf32>
    tpu.vector_store %arg6[%c0_18, %c0_19], %34 {strides = array<i32>} : memref<2x256xf32, #tpu.memory_space<vmem>>, vector<2x32xf32>,
    %36 = vector.extract_strided_slice %7 {offsets = [0, 1, 0], sizes = [2, 1, 128], strides = [1, 1, 1]} : vector<2x8x128xf32> to vector<2x1x128xf32>
    %37 = vector.shape_cast %36 : vector<2x1x128xf32> to vector<2x128xf32>
    %cst_20 = arith.constant dense<0.000000e+00> : vector<2x128xf32>
    %38 = tpu.matmul %34, %8, %cst_20 {dimension_numbers = #tpu.dot_dimension_numbers<[1], [0], [0], [1], [0, 0, 1, 1], [], []>} : vector<2x32xf32>, vector<32x128xf32>, vector<2x128xf32> -> vector<2x128xf32>
    %39 = arith.addf %37, %38 : vector<2x128xf32>
    %40 = arith.negf %39 : vector<2x128xf32>
    %41 = math.exp %40 : vector<2x128xf32>
    %cst_21 = arith.constant 1.000000e+00 : f32
    %42 = vector.broadcast %cst_21 : f32 to vector<2x128xf32>
    %43 = arith.addf %42, %41 : vector<2x128xf32>
    %44 = arith.divf %42, %43 : vector<2x128xf32>
    %45 = vector.extract_strided_slice %44 {offsets = [0, 0], sizes = [2, 32], strides = [1, 1]} : vector<2x128xf32> to vector<2x32xf32>
    %46 = vector.extract_strided_slice %44 {offsets = [0, 32], sizes = [2, 32], strides = [1, 1]} : vector<2x128xf32> to vector<2x32xf32>
    %47 = vector.extract_strided_slice %44 {offsets = [0, 64], sizes = [2, 32], strides = [1, 1]} : vector<2x128xf32> to vector<2x32xf32>
    %cst_22 = arith.constant 2.000000e+00 : f32
    %48 = vector.broadcast %cst_22 : f32 to vector<2x32xf32>
    %49 = arith.mulf %48, %47 : vector<2x32xf32>
    %cst_23 = arith.constant 1.000000e+00 : f32
    %50 = vector.broadcast %cst_23 : f32 to vector<2x32xf32>
    %51 = arith.subf %49, %50 : vector<2x32xf32>
    %52 = vector.extract_strided_slice %44 {offsets = [0, 96], sizes = [2, 32], strides = [1, 1]} : vector<2x128xf32> to vector<2x32xf32>
    %53 = arith.mulf %46, %32 : vector<2x32xf32>
    %54 = arith.mulf %45, %51 : vector<2x32xf32>
    %55 = arith.addf %53, %54 : vector<2x32xf32>
    %56 = math.tanh %55 : vector<2x32xf32>
    %57 = arith.mulf %52, %56 : vector<2x32xf32>
    %c0_24 = arith.constant 0 : index
    %c32 = arith.constant 32 : index
    %58 = vector.load %arg6[%c0_24, %c32] : memref<2x256xf32, #tpu.memory_space<vmem>>, vector<2x32xf32>
    tpu.vector_store %arg6[%c0_24, %c32], %57 {strides = array<i32>} : memref<2x256xf32, #tpu.memory_space<vmem>>, vector<2x32xf32>,
    %59 = vector.extract_strided_slice %7 {offsets = [0, 2, 0], sizes = [2, 1, 128], strides = [1, 1, 1]} : vector<2x8x128xf32> to vector<2x1x128xf32>
    %60 = vector.shape_cast %59 : vector<2x1x128xf32> to vector<2x128xf32>
    %cst_25 = arith.constant dense<0.000000e+00> : vector<2x128xf32>
    %61 = tpu.matmul %57, %8, %cst_25 {dimension_numbers = #tpu.dot_dimension_numbers<[1], [0], [0], [1], [0, 0, 1, 1], [], []>} : vector<2x32xf32>, vector<32x128xf32>, vector<2x128xf32> -> vector<2x128xf32>
    %62 = arith.addf %60, %61 : vector<2x128xf32>
    %63 = arith.negf %62 : vector<2x128xf32>
    %64 = math.exp %63 : vector<2x128xf32>
    %cst_26 = arith.constant 1.000000e+00 : f32
    %65 = vector.broadcast %cst_26 : f32 to vector<2x128xf32>
    %66 = arith.addf %65, %64 : vector<2x128xf32>
    %67 = arith.divf %65, %66 : vector<2x128xf32>
    %68 = vector.extract_strided_slice %67 {offsets = [0, 0], sizes = [2, 32], strides = [1, 1]} : vector<2x128xf32> to vector<2x32xf32>
    %69 = vector.extract_strided_slice %67 {offsets = [0, 32], sizes = [2, 32], strides = [1, 1]} : vector<2x128xf32> to vector<2x32xf32>
    %70 = vector.extract_strided_slice %67 {offsets = [0, 64], sizes = [2, 32], strides = [1, 1]} : vector<2x128xf32> to vector<2x32xf32>
    %cst_27 = arith.constant 2.000000e+00 : f32
    %71 = vector.broadcast %cst_27 : f32 to vector<2x32xf32>
    %72 = arith.mulf %71, %70 : vector<2x32xf32>
    %cst_28 = arith.constant 1.000000e+00 : f32
    %73 = vector.broadcast %cst_28 : f32 to vector<2x32xf32>
    %74 = arith.subf %72, %73 : vector<2x32xf32>
    %75 = vector.extract_strided_slice %67 {offsets = [0, 96], sizes = [2, 32], strides = [1, 1]} : vector<2x128xf32> to vector<2x32xf32>
    %76 = arith.mulf %69, %55 : vector<2x32xf32>
    %77 = arith.mulf %68, %74 : vector<2x32xf32>
    %78 = arith.addf %76, %77 : vector<2x32xf32>
    %79 = math.tanh %78 : vector<2x32xf32>
    %80 = arith.mulf %75, %79 : vector<2x32xf32>
    %c0_29 = arith.constant 0 : index
    %c64 = arith.constant 64 : index
    %81 = vector.load %arg6[%c0_29, %c64] : memref<2x256xf32, #tpu.memory_space<vmem>>, vector<2x32xf32>
    tpu.vector_store %arg6[%c0_29, %c64], %80 {strides = array<i32>} : memref<2x256xf32, #tpu.memory_space<vmem>>, vector<2x32xf32>,
    %82 = vector.extract_strided_slice %7 {offsets = [0, 3, 0], sizes = [2, 1, 128], strides = [1, 1, 1]} : vector<2x8x128xf32> to vector<2x1x128xf32>
    %83 = vector.shape_cast %82 : vector<2x1x128xf32> to vector<2x128xf32>
    %cst_30 = arith.constant dense<0.000000e+00> : vector<2x128xf32>
    %84 = tpu.matmul %80, %8, %cst_30 {dimension_numbers = #tpu.dot_dimension_numbers<[1], [0], [0], [1], [0, 0, 1, 1], [], []>} : vector<2x32xf32>, vector<32x128xf32>, vector<2x128xf32> -> vector<2x128xf32>
    %85 = arith.addf %83, %84 : vector<2x128xf32>
    %86 = arith.negf %85 : vector<2x128xf32>
    %87 = math.exp %86 : vector<2x128xf32>
    %cst_31 = arith.constant 1.000000e+00 : f32
    %88 = vector.broadcast %cst_31 : f32 to vector<2x128xf32>
    %89 = arith.addf %88, %87 : vector<2x128xf32>
    %90 = arith.divf %88, %89 : vector<2x128xf32>
    %91 = vector.extract_strided_slice %90 {offsets = [0, 0], sizes = [2, 32], strides = [1, 1]} : vector<2x128xf32> to vector<2x32xf32>
    %92 = vector.extract_strided_slice %90 {offsets = [0, 32], sizes = [2, 32], strides = [1, 1]} : vector<2x128xf32> to vector<2x32xf32>
    %93 = vector.extract_strided_slice %90 {offsets = [0, 64], sizes = [2, 32], strides = [1, 1]} : vector<2x128xf32> to vector<2x32xf32>
    %cst_32 = arith.constant 2.000000e+00 : f32
    %94 = vector.broadcast %cst_32 : f32 to vector<2x32xf32>
    %95 = arith.mulf %94, %93 : vector<2x32xf32>
    %cst_33 = arith.constant 1.000000e+00 : f32
    %96 = vector.broadcast %cst_33 : f32 to vector<2x32xf32>
    %97 = arith.subf %95, %96 : vector<2x32xf32>
    %98 = vector.extract_strided_slice %90 {offsets = [0, 96], sizes = [2, 32], strides = [1, 1]} : vector<2x128xf32> to vector<2x32xf32>
    %99 = arith.mulf %92, %78 : vector<2x32xf32>
    %100 = arith.mulf %91, %97 : vector<2x32xf32>
    %101 = arith.addf %99, %100 : vector<2x32xf32>
    %102 = math.tanh %101 : vector<2x32xf32>
    %103 = arith.mulf %98, %102 : vector<2x32xf32>
    %c0_34 = arith.constant 0 : index
    %c96 = arith.constant 96 : index
    %104 = vector.load %arg6[%c0_34, %c96] : memref<2x256xf32, #tpu.memory_space<vmem>>, vector<2x32xf32>
    tpu.vector_store %arg6[%c0_34, %c96], %103 {strides = array<i32>} : memref<2x256xf32, #tpu.memory_space<vmem>>, vector<2x32xf32>,
    %105 = vector.extract_strided_slice %7 {offsets = [0, 4, 0], sizes = [2, 1, 128], strides = [1, 1, 1]} : vector<2x8x128xf32> to vector<2x1x128xf32>
    %106 = vector.shape_cast %105 : vector<2x1x128xf32> to vector<2x128xf32>
    %cst_35 = arith.constant dense<0.000000e+00> : vector<2x128xf32>
    %107 = tpu.matmul %103, %8, %cst_35 {dimension_numbers = #tpu.dot_dimension_numbers<[1], [0], [0], [1], [0, 0, 1, 1], [], []>} : vector<2x32xf32>, vector<32x128xf32>, vector<2x128xf32> -> vector<2x128xf32>
    %108 = arith.addf %106, %107 : vector<2x128xf32>
    %109 = arith.negf %108 : vector<2x128xf32>
    %110 = math.exp %109 : vector<2x128xf32>
    %cst_36 = arith.constant 1.000000e+00 : f32
    %111 = vector.broadcast %cst_36 : f32 to vector<2x128xf32>
    %112 = arith.addf %111, %110 : vector<2x128xf32>
    %113 = arith.divf %111, %112 : vector<2x128xf32>
    %114 = vector.extract_strided_slice %113 {offsets = [0, 0], sizes = [2, 32], strides = [1, 1]} : vector<2x128xf32> to vector<2x32xf32>
    %115 = vector.extract_strided_slice %113 {offsets = [0, 32], sizes = [2, 32], strides = [1, 1]} : vector<2x128xf32> to vector<2x32xf32>
    %116 = vector.extract_strided_slice %113 {offsets = [0, 64], sizes = [2, 32], strides = [1, 1]} : vector<2x128xf32> to vector<2x32xf32>
    %cst_37 = arith.constant 2.000000e+00 : f32
    %117 = vector.broadcast %cst_37 : f32 to vector<2x32xf32>
    %118 = arith.mulf %117, %116 : vector<2x32xf32>
    %cst_38 = arith.constant 1.000000e+00 : f32
    %119 = vector.broadcast %cst_38 : f32 to vector<2x32xf32>
    %120 = arith.subf %118, %119 : vector<2x32xf32>
    %121 = vector.extract_strided_slice %113 {offsets = [0, 96], sizes = [2, 32], strides = [1, 1]} : vector<2x128xf32> to vector<2x32xf32>
    %122 = arith.mulf %115, %101 : vector<2x32xf32>
    %123 = arith.mulf %114, %120 : vector<2x32xf32>
    %124 = arith.addf %122, %123 : vector<2x32xf32>
    %125 = math.tanh %124 : vector<2x32xf32>
    %126 = arith.mulf %121, %125 : vector<2x32xf32>
    %c0_39 = arith.constant 0 : index
    %c128 = arith.constant 128 : index
    %127 = vector.load %arg6[%c0_39, %c128] : memref<2x256xf32, #tpu.memory_space<vmem>>, vector<2x32xf32>
    tpu.vector_store %arg6[%c0_39, %c128], %126 {strides = array<i32>} : memref<2x256xf32, #tpu.memory_space<vmem>>, vector<2x32xf32>,
    %128 = vector.extract_strided_slice %7 {offsets = [0, 5, 0], sizes = [2, 1, 128], strides = [1, 1, 1]} : vector<2x8x128xf32> to vector<2x1x128xf32>
    %129 = vector.shape_cast %128 : vector<2x1x128xf32> to vector<2x128xf32>
    %cst_40 = arith.constant dense<0.000000e+00> : vector<2x128xf32>
    %130 = tpu.matmul %126, %8, %cst_40 {dimension_numbers = #tpu.dot_dimension_numbers<[1], [0], [0], [1], [0, 0, 1, 1], [], []>} : vector<2x32xf32>, vector<32x128xf32>, vector<2x128xf32> -> vector<2x128xf32>
    %131 = arith.addf %129, %130 : vector<2x128xf32>
    %132 = arith.negf %131 : vector<2x128xf32>
    %133 = math.exp %132 : vector<2x128xf32>
    %cst_41 = arith.constant 1.000000e+00 : f32
    %134 = vector.broadcast %cst_41 : f32 to vector<2x128xf32>
    %135 = arith.addf %134, %133 : vector<2x128xf32>
    %136 = arith.divf %134, %135 : vector<2x128xf32>
    %137 = vector.extract_strided_slice %136 {offsets = [0, 0], sizes = [2, 32], strides = [1, 1]} : vector<2x128xf32> to vector<2x32xf32>
    %138 = vector.extract_strided_slice %136 {offsets = [0, 32], sizes = [2, 32], strides = [1, 1]} : vector<2x128xf32> to vector<2x32xf32>
    %139 = vector.extract_strided_slice %136 {offsets = [0, 64], sizes = [2, 32], strides = [1, 1]} : vector<2x128xf32> to vector<2x32xf32>
    %cst_42 = arith.constant 2.000000e+00 : f32
    %140 = vector.broadcast %cst_42 : f32 to vector<2x32xf32>
    %141 = arith.mulf %140, %139 : vector<2x32xf32>
    %cst_43 = arith.constant 1.000000e+00 : f32
    %142 = vector.broadcast %cst_43 : f32 to vector<2x32xf32>
    %143 = arith.subf %141, %142 : vector<2x32xf32>
    %144 = vector.extract_strided_slice %136 {offsets = [0, 96], sizes = [2, 32], strides = [1, 1]} : vector<2x128xf32> to vector<2x32xf32>
    %145 = arith.mulf %138, %124 : vector<2x32xf32>
    %146 = arith.mulf %137, %143 : vector<2x32xf32>
    %147 = arith.addf %145, %146 : vector<2x32xf32>
    %148 = math.tanh %147 : vector<2x32xf32>
    %149 = arith.mulf %144, %148 : vector<2x32xf32>
    %c0_44 = arith.constant 0 : index
    %c160 = arith.constant 160 : index
    %150 = vector.load %arg6[%c0_44, %c160] : memref<2x256xf32, #tpu.memory_space<vmem>>, vector<2x32xf32>
    tpu.vector_store %arg6[%c0_44, %c160], %149 {strides = array<i32>} : memref<2x256xf32, #tpu.memory_space<vmem>>, vector<2x32xf32>,
    %151 = vector.extract_strided_slice %7 {offsets = [0, 6, 0], sizes = [2, 1, 128], strides = [1, 1, 1]} : vector<2x8x128xf32> to vector<2x1x128xf32>
    %152 = vector.shape_cast %151 : vector<2x1x128xf32> to vector<2x128xf32>
    %cst_45 = arith.constant dense<0.000000e+00> : vector<2x128xf32>
    %153 = tpu.matmul %149, %8, %cst_45 {dimension_numbers = #tpu.dot_dimension_numbers<[1], [0], [0], [1], [0, 0, 1, 1], [], []>} : vector<2x32xf32>, vector<32x128xf32>, vector<2x128xf32> -> vector<2x128xf32>
    %154 = arith.addf %152, %153 : vector<2x128xf32>
    %155 = arith.negf %154 : vector<2x128xf32>
    %156 = math.exp %155 : vector<2x128xf32>
    %cst_46 = arith.constant 1.000000e+00 : f32
    %157 = vector.broadcast %cst_46 : f32 to vector<2x128xf32>
    %158 = arith.addf %157, %156 : vector<2x128xf32>
    %159 = arith.divf %157, %158 : vector<2x128xf32>
    %160 = vector.extract_strided_slice %159 {offsets = [0, 0], sizes = [2, 32], strides = [1, 1]} : vector<2x128xf32> to vector<2x32xf32>
    %161 = vector.extract_strided_slice %159 {offsets = [0, 32], sizes = [2, 32], strides = [1, 1]} : vector<2x128xf32> to vector<2x32xf32>
    %162 = vector.extract_strided_slice %159 {offsets = [0, 64], sizes = [2, 32], strides = [1, 1]} : vector<2x128xf32> to vector<2x32xf32>
    %cst_47 = arith.constant 2.000000e+00 : f32
    %163 = vector.broadcast %cst_47 : f32 to vector<2x32xf32>
    %164 = arith.mulf %163, %162 : vector<2x32xf32>
    %cst_48 = arith.constant 1.000000e+00 : f32
    %165 = vector.broadcast %cst_48 : f32 to vector<2x32xf32>
    %166 = arith.subf %164, %165 : vector<2x32xf32>
    %167 = vector.extract_strided_slice %159 {offsets = [0, 96], sizes = [2, 32], strides = [1, 1]} : vector<2x128xf32> to vector<2x32xf32>
    %168 = arith.mulf %161, %147 : vector<2x32xf32>
    %169 = arith.mulf %160, %166 : vector<2x32xf32>
    %170 = arith.addf %168, %169 : vector<2x32xf32>
    %171 = math.tanh %170 : vector<2x32xf32>
    %172 = arith.mulf %167, %171 : vector<2x32xf32>
    %c0_49 = arith.constant 0 : index
    %c192 = arith.constant 192 : index
    %173 = vector.load %arg6[%c0_49, %c192] : memref<2x256xf32, #tpu.memory_space<vmem>>, vector<2x32xf32>
    tpu.vector_store %arg6[%c0_49, %c192], %172 {strides = array<i32>} : memref<2x256xf32, #tpu.memory_space<vmem>>, vector<2x32xf32>,
    %174 = vector.extract_strided_slice %7 {offsets = [0, 7, 0], sizes = [2, 1, 128], strides = [1, 1, 1]} : vector<2x8x128xf32> to vector<2x1x128xf32>
    %175 = vector.shape_cast %174 : vector<2x1x128xf32> to vector<2x128xf32>
    %cst_50 = arith.constant dense<0.000000e+00> : vector<2x128xf32>
    %176 = tpu.matmul %172, %8, %cst_50 {dimension_numbers = #tpu.dot_dimension_numbers<[1], [0], [0], [1], [0, 0, 1, 1], [], []>} : vector<2x32xf32>, vector<32x128xf32>, vector<2x128xf32> -> vector<2x128xf32>
    %177 = arith.addf %175, %176 : vector<2x128xf32>
    %178 = arith.negf %177 : vector<2x128xf32>
    %179 = math.exp %178 : vector<2x128xf32>
    %cst_51 = arith.constant 1.000000e+00 : f32
    %180 = vector.broadcast %cst_51 : f32 to vector<2x128xf32>
    %181 = arith.addf %180, %179 : vector<2x128xf32>
    %182 = arith.divf %180, %181 : vector<2x128xf32>
    %183 = vector.extract_strided_slice %182 {offsets = [0, 0], sizes = [2, 32], strides = [1, 1]} : vector<2x128xf32> to vector<2x32xf32>
    %184 = vector.extract_strided_slice %182 {offsets = [0, 32], sizes = [2, 32], strides = [1, 1]} : vector<2x128xf32> to vector<2x32xf32>
    %185 = vector.extract_strided_slice %182 {offsets = [0, 64], sizes = [2, 32], strides = [1, 1]} : vector<2x128xf32> to vector<2x32xf32>
    %cst_52 = arith.constant 2.000000e+00 : f32
    %186 = vector.broadcast %cst_52 : f32 to vector<2x32xf32>
    %187 = arith.mulf %186, %185 : vector<2x32xf32>
    %cst_53 = arith.constant 1.000000e+00 : f32
    %188 = vector.broadcast %cst_53 : f32 to vector<2x32xf32>
    %189 = arith.subf %187, %188 : vector<2x32xf32>
    %190 = vector.extract_strided_slice %182 {offsets = [0, 96], sizes = [2, 32], strides = [1, 1]} : vector<2x128xf32> to vector<2x32xf32>
    %191 = arith.mulf %184, %170 : vector<2x32xf32>
    %192 = arith.mulf %183, %189 : vector<2x32xf32>
    %193 = arith.addf %191, %192 : vector<2x32xf32>
    %194 = math.tanh %193 : vector<2x32xf32>
    %195 = arith.mulf %190, %194 : vector<2x32xf32>
    %c0_54 = arith.constant 0 : index
    %c224 = arith.constant 224 : index
    %196 = vector.load %arg6[%c0_54, %c224] : memref<2x256xf32, #tpu.memory_space<vmem>>, vector<2x32xf32>
    tpu.vector_store %arg6[%c0_54, %c224], %195 {strides = array<i32>} : memref<2x256xf32, #tpu.memory_space<vmem>>, vector<2x32xf32>,
    %c0_55 = arith.constant 0 : index
    %c0_56 = arith.constant 0 : index
    %c0_57 = arith.constant 0 : index
    %197 = vector.load %arg7[%c0_55, %c0_56, %c0_57] : memref<1x2x32xf32, #tpu.memory_space<vmem>>, vector<1x2x32xf32>
    %198 = vector.shape_cast %197 : vector<1x2x32xf32> to vector<2x32xf32>
    %199 = vector.shape_cast %195 : vector<2x32xf32> to vector<1x2x32xf32>
    tpu.vector_store %arg7[%c0_55, %c0_56, %c0_57], %199 {strides = array<i32>} : memref<1x2x32xf32, #tpu.memory_space<vmem>>, vector<1x2x32xf32>,
    %c0_58 = arith.constant 0 : index
    %c0_59 = arith.constant 0 : index
    %c0_60 = arith.constant 0 : index
    %200 = vector.load %arg8[%c0_58, %c0_59, %c0_60] : memref<1x2x32xf32, #tpu.memory_space<vmem>>, vector<1x2x32xf32>
    %201 = vector.shape_cast %200 : vector<1x2x32xf32> to vector<2x32xf32>
    %202 = vector.shape_cast %193 : vector<2x32xf32> to vector<1x2x32xf32>
    tpu.vector_store %arg8[%c0_58, %c0_59, %c0_60], %202 {strides = array<i32>} : memref<1x2x32xf32, #tpu.memory_space<vmem>>, vector<1x2x32xf32>,
    return
  }
}

</mosaic_0001>

<llo_original>
// kernel: tpu_custom_call.1
$region0: #{tpu_custom_call.1}
  #allocation0 [shape = 'u32[]', space=smem, size = 0x4, offset = 0x4, fixed_abs, tag = 'smem constant byte address 0x4 - core index']
  #allocation1 [shape = 'u32[72,128]{1,0:T(1,128)}', space=vmem, size = 0x9000, scoped, tag = 'internal scratch']
  %s0 = inlined_call_operand.hbm [shape: f32[2,8,32], index: 0, kind: input, shape index: {}]
  %s1 = inlined_call_operand.hbm [shape: f32[1,2,32], index: 1, kind: input, shape index: {}]
  %s2 = inlined_call_operand.hbm [shape: f32[1,2,32], index: 2, kind: input, shape index: {}]
  %s3 = inlined_call_operand.hbm [shape: f32[32,128], index: 3, kind: input, shape index: {}]
  %s4 = inlined_call_operand.hbm [shape: f32[32,128], index: 4, kind: input, shape index: {}]
  %s5 = inlined_call_operand.vmem [shape: f32[1,128], index: 5, kind: input, shape index: {}]
  %s6 = inlined_call_operand.hbm [shape: f32[2,256], index: 6, kind: output, shape index: {0}]
  %s7 = inlined_call_operand.hbm [shape: f32[1,2,32], index: 7, kind: output, shape index: {1}]
  %s8 = inlined_call_operand.hbm [shape: f32[1,2,32], index: 8, kind: output, shape index: {2}]
  %9 = xla_tuple %s6, %s7, %s8
  %s10 = sld [smem:[#allocation0]]
  $region70: #{tpu_custom_call.1} parent=0
    _
  %s12 = ssub.s32 1, %s10
  %s13 = scalar_select 0, %s12, %s10
  $region1: #{tpu_custom_call.1} parent=0
    #allocation2 [shape = 'u8[8192]{0}', space=vmem, size = 0x2000, scoped, tag = 'input window, operand 0, single buffered']
    #allocation3 [shape = 's32[1]{0}', space=sflag, size = 0x4, scoped, tag = 'scoped memory for tpu_custom_call.1']
    #allocation4 [shape = 's32[1]{0}', space=sflag, size = 0x4, scoped, tag = 'scoped memory for tpu_custom_call.1']
    #allocation5 [shape = 'u8[1024]{0}', space=vmem, size = 0x400, scoped, tag = 'input window, operand 1, single buffered']
    #allocation6 [shape = 's32[1]{0}', space=sflag, size = 0x4, scoped, tag = 'scoped memory for tpu_custom_call.1']
    #allocation7 [shape = 'u8[1024]{0}', space=vmem, size = 0x400, scoped, tag = 'input window, operand 2, single buffered']
    #allocation8 [shape = 'u8[16384]{0}', space=vmem, size = 0x4000, scoped, tag = 'input window, operand 3, single buffered']
    #allocation9 [shape = 's32[1]{0}', space=sflag, size = 0x4, scoped, tag = 'scoped memory for tpu_custom_call.1']
    #allocation10 [shape = 'u8[16384]{0}', space=vmem, size = 0x4000, scoped, tag = 'input window, operand 4, single buffered']
    #allocation11 [shape = 'u8[2048]{0}', space=vmem, size = 0x800, scoped, tag = 'output window, operand 0, single buffered']
    #allocation12 [shape = 'u8[1024]{0}', space=vmem, size = 0x400, scoped, tag = 'output window, operand 1, single buffered']
    #allocation13 [shape = 's32[1]{0}', space=sflag, size = 0x4, scoped, tag = 'scoped memory for tpu_custom_call.1']
    #allocation14 [shape = 'u8[1024]{0}', space=vmem, size = 0x400, scoped, tag = 'output window, operand 2, single buffered']
    %14 = vsyncpa [#allocation3], 0
    %15 = vsyncpa [#allocation6], 0
    %16 = vsyncpa [#allocation9], 0
    %17 = vsyncpa [#allocation4], 0
    %18 = vsyncpa [#allocation13], 0
    // Predicated region
    $region2: #{tpu_custom_call.1} parent=1 // pred_check
      _
    $region3: #{tpu_custom_call.1} parent=1 // pred_check_branch
      %20 = sbr.rel (0) target = $region5
    $region4: #{tpu_custom_call.1} parent=1 // pred_region
      %22 = vsyncadd [#allocation3], 0
      %s23 = sshll.u32 %s0, 4
      %s24 = int_to_ptr.hbm [resolvable:$true] %s23
      %s25 = sshll.u32 [#allocation2], 4
      %s26 = int_to_ptr.vmem [resolvable:$true] %s25
      %31 = dma.hbm_to_vmem [thread:$0]  %s24, 256, %s26, [#allocation3], 128, 128, 8
    $region5: #{tpu_custom_call.1} parent=1 // pred_fallthru
      _
    // Predicated region
    $region6: #{tpu_custom_call.1} parent=1 // pred_check
      _
    $region7: #{tpu_custom_call.1} parent=1 // pred_check_branch
      %33 = sbr.rel (0) target = $region9
    $region8: #{tpu_custom_call.1} parent=1 // pred_region
      %35 = vsyncadd [#allocation6], 0
      %s37 = sshll.u32 %s1, 4
      %s38 = int_to_ptr.hbm [resolvable:$true] %s37
      %s39 = sshll.u32 [#allocation5], 4
      %s40 = int_to_ptr.vmem [resolvable:$true] %s39
      %42 = dma.hbm_to_vmem [thread:$0]  %s38, 32, %s40, [#allocation6]
    $region9: #{tpu_custom_call.1} parent=1 // pred_fallthru
      _
    // Predicated region
    $region10: #{tpu_custom_call.1} parent=1 // pred_check
      _
    $region11: #{tpu_custom_call.1} parent=1 // pred_check_branch
      %44 = sbr.rel (0) target = $region13
    $region12: #{tpu_custom_call.1} parent=1 // pred_region
      %46 = vsyncadd [#allocation6], 0
      %s48 = sshll.u32 %s2, 4
      %s49 = int_to_ptr.hbm [resolvable:$true] %s48
      %s50 = sshll.u32 [#allocation7], 4
      %s51 = int_to_ptr.vmem [resolvable:$true] %s50
      %53 = dma.hbm_to_vmem [thread:$0]  %s49, 32, %s51, [#allocation6]
    $region13: #{tpu_custom_call.1} parent=1 // pred_fallthru
      _
    // Predicated region
    $region14: #{tpu_custom_call.1} parent=1 // pred_check
      _
    $region15: #{tpu_custom_call.1} parent=1 // pred_check_branch
      %55 = sbr.rel (0) target = $region17
    $region16: #{tpu_custom_call.1} parent=1 // pred_region
      %57 = vsyncadd [#allocation9], 0
      %s58 = sshll.u32 %s3, 4
      %s59 = int_to_ptr.hbm [resolvable:$true] %s58
      %s60 = sshll.u32 [#allocation8], 4
      %s61 = int_to_ptr.vmem [resolvable:$true] %s60
      %66 = dma.hbm_to_vmem [thread:$0]  %s59, 512, %s61, [#allocation9], 128, 128, 8
    $region17: #{tpu_custom_call.1} parent=1 // pred_fallthru
      _
    // Predicated region
    $region18: #{tpu_custom_call.1} parent=1 // pred_check
      _
    $region19: #{tpu_custom_call.1} parent=1 // pred_check_branch
      %68 = sbr.rel (0) target = $region21
    $region20: #{tpu_custom_call.1} parent=1 // pred_region
      %70 = vsyncadd [#allocation9], 0
      %s71 = sshll.u32 %s4, 4
      %s72 = int_to_ptr.hbm [resolvable:$true] %s71
      %s73 = sshll.u32 [#allocation10], 4
      %s74 = int_to_ptr.vmem [resolvable:$true] %s73
      %79 = dma.hbm_to_vmem [thread:$0]  %s72, 512, %s74, [#allocation9], 128, 128, 8
    $region21: #{tpu_custom_call.1} parent=1 // pred_fallthru
      _
    // Predicated region
    $region22: #{tpu_custom_call.1} parent=1 // pred_check
      _
    $region23: #{tpu_custom_call.1} parent=1 // pred_check_branch
      %81 = sbr.rel (0) target = $region25
    $region24: #{tpu_custom_call.1} parent=1 // pred_region
      _
    $region25: #{tpu_custom_call.1} parent=1 // pred_fallthru
      _
    // Predicated region
    $region26: #{tpu_custom_call.1} parent=1 // pred_check
      _
    $region27: #{tpu_custom_call.1} parent=1 // pred_check_branch
      %83 = sbr.rel (0) target = $region29
    $region28: #{tpu_custom_call.1} parent=1 // pred_region
      %85 = dma.done [#allocation3], 256
    $region29: #{tpu_custom_call.1} parent=1 // pred_fallthru
      _
    // Predicated region
    $region30: #{tpu_custom_call.1} parent=1 // pred_check
      _
    $region31: #{tpu_custom_call.1} parent=1 // pred_check_branch
      %87 = sbr.rel (0) target = $region33
    $region32: #{tpu_custom_call.1} parent=1 // pred_region
      %89 = dma.done [#allocation6], 32
    $region33: #{tpu_custom_call.1} parent=1 // pred_fallthru
      _
    // Predicated region
    $region34: #{tpu_custom_call.1} parent=1 // pred_check
      _
    $region35: #{tpu_custom_call.1} parent=1 // pred_check_branch
      %91 = sbr.rel (0) target = $region37
    $region36: #{tpu_custom_call.1} parent=1 // pred_region
      %93 = dma.done [#allocation6], 32
    $region37: #{tpu_custom_call.1} parent=1 // pred_fallthru
      _
    // Predicated region
    $region38: #{tpu_custom_call.1} parent=1 // pred_check
      _
    $region39: #{tpu_custom_call.1} parent=1 // pred_check_branch
      %95 = sbr.rel (0) target = $region41
    $region40: #{tpu_custom_call.1} parent=1 // pred_region
      %97 = dma.done [#allocation9], 512
    $region41: #{tpu_custom_call.1} parent=1 // pred_fallthru
      _
    // Predicated region
    $region42: #{tpu_custom_call.1} parent=1 // pred_check
      _
    $region43: #{tpu_custom_call.1} parent=1 // pred_check_branch
      %99 = sbr.rel (0) target = $region45
    $region44: #{tpu_custom_call.1} parent=1 // pred_region
      %101 = dma.done [#allocation9], 512
    $region45: #{tpu_custom_call.1} parent=1 // pred_fallthru
      _
    %v102 = vld [vmem:[#allocation2] sm:$0xff]
    %v103 = vld [vmem:[#allocation2 + $0x8] sm:$0xff]
    %v104 = vld [vmem:[#allocation8] sm:$0xff]
    %v105 = vld [vmem:[#allocation8 + $0x8] sm:$0xff]
    %v106 = vld [vmem:[#allocation8 + $0x10] sm:$0xff]
    %v107 = vld [vmem:[#allocation8 + $0x18] sm:$0xff]
    %v108 = vld [vmem:[%s5] sm:$0x1]
    %v110 = vperm.slane %v108, 0
    %vm112 = vcmask 261120
    %v114 = vsel %vm112, %v102, 0
    %v117 = vsel %vm112, %v103, 0
    %119 = vmatpush.msra.mxu0 0.0
    %120 = vmatpush.msra.mxu0 0.0
    %121 = vmatpush.msra.mxu0 0.0
    %122 = vmatpush.msra.mxu0 0.0
    %123 = vmatpush.msra.mxu0 0.0
    %124 = vmatpush.msra.mxu0 0.0
    %125 = vmatpush.msra.mxu0 0.0
    %126 = vmatpush.msra.mxu0 0.0
    %127 = vmatpush.msra.mxu0 0.0
    %128 = vmatpush.msra.mxu0 0.0
    %129 = vmatpush.msra.mxu0 0.0
    %130 = vmatpush.msra.mxu0 0.0
    %131 = vmatpush.msra.mxu0 %v107
    %132 = vmatpush.msra.mxu0 %v106
    %133 = vmatpush.msra.mxu0 %v105
    %134 = vmatpush.msra.mxu0 %v104
    %135 = vmatmul.f32.gmra.mxu0 %v114
    %v136 = vpop.f32.mrf.mxu0
    %v137 = vadd.f32 %v110, %v136
    %138 = vmatmul.f32.gmra.mxu0 %v117
    %v139 = vpop.f32.mrf.mxu0
    %v140 = vadd.f32 %v110, %v139
    %141 = vdwg.mxu0
    %v142 = vld [vmem:[#allocation10] sm:$0xff]
    %v143 = vld [vmem:[#allocation10 + $0x8] sm:$0xff]
    %v144 = vld [vmem:[#allocation10 + $0x10] sm:$0xff]
    %v145 = vld [vmem:[#allocation10 + $0x18] sm:$0xff]
    %v146 = vld [vmem:[#allocation5] sm:$0x3]
    %v147 = vld [vmem:[#allocation7] sm:$0x3]
    %v149 = vsel %vm112, %v146, 0
    %151 = vmatpush.msra.mxu0 0.0
    %152 = vmatpush.msra.mxu0 0.0
    %153 = vmatpush.msra.mxu0 0.0
    %154 = vmatpush.msra.mxu0 0.0
    %155 = vmatpush.msra.mxu0 0.0
    %156 = vmatpush.msra.mxu0 0.0
    %157 = vmatpush.msra.mxu0 0.0
    %158 = vmatpush.msra.mxu0 0.0
    %159 = vmatpush.msra.mxu0 0.0
    %160 = vmatpush.msra.mxu0 0.0
    %161 = vmatpush.msra.mxu0 0.0
    %162 = vmatpush.msra.mxu0 0.0
    %163 = vmatpush.msra.mxu0 %v145
    %164 = vmatpush.msra.mxu0 %v144
    %165 = vmatpush.msra.mxu0 %v143
    %166 = vmatpush.msra.mxu0 %v142
    %167 = vmatmul.f32.gmra.mxu0 %v149
    %v168 = vpop.f32.mrf.mxu0
    %v169 = vadd.f32 0.0, %v168
    %170 = vdwg.mxu0
    %v172 = vrot.slane %v169, 1
    %v175 = vadd.f32 %v137, %v169
    %v176 = vadd.f32 %v140, %v172
    %v177 = vxor.u32 %v175, 2147483648
    %v178 = vxor.u32 %v176, 2147483648
    %v179 = vmul.f32 %v177, 1.442695
    %v180 = vpow.pop %v179
    %v181 = vmul.f32 %v178, 1.442695
    %v182 = vpow.pop %v181
    %v183 = vadd.f32 %v180, 1.0
    %v184 = vadd.f32 %v182, 1.0
    %v185 = vrcp.pop %v183
    %v186 = vmul.f32 %v183, %v185
    %v187 = vsub.f32 1.0, %v186
    %v188 = vmul.f32 %v185, %v187
    %v189 = vadd.f32 %v185, %v188
    %vm190 = vweird.f32 %v183
    %vm191 = vweird.f32 %v185
    %vm192 = vmor %vm190, %vm191
    %v193 = vsel %vm192, %v185, %v189
    %v194 = vand.u32 2147483647, %v183
    %vm195 = vcmp.eq.f32.partialorder %v194, 8.507059e+37
    %v196 = vand.u32 %v183, 2147483648
    %v197 = vor.u32 1.1754944e-38, %v196
    %v198 = vsel %vm195, %v197, %v193
    %v199 = vmul.f32 1.0, %v198
    %v200 = vrcp.pop %v184
    %v201 = vmul.f32 %v184, %v200
    %v202 = vsub.f32 1.0, %v201
    %v203 = vmul.f32 %v200, %v202
    %v204 = vadd.f32 %v200, %v203
    %vm205 = vweird.f32 %v184
    %vm206 = vweird.f32 %v200
    %vm207 = vmor %vm205, %vm206
    %v208 = vsel %vm207, %v200, %v204
    %v209 = vand.u32 2147483647, %v184
    %vm210 = vcmp.eq.f32.partialorder %v209, 8.507059e+37
    %v211 = vand.u32 %v184, 2147483648
    %v212 = vor.u32 1.1754944e-38, %v211
    %v213 = vsel %vm210, %v212, %v208
    %v214 = vmul.f32 1.0, %v213
    %v215 = vmul.f32 %v199, 2.0
    %v216 = vmul.f32 %v214, 2.0
    %v217 = vsub.f32 %v215, 1.0
    %v218 = vsub.f32 %v216, 1.0
    %v220 = vrot.slane %v147, 1
    %221 = vrot.lane.b32.xlu0 %v147, 32
    %v222 = vpop.permute.xlu0 %221
    %223 = vrot.lane.b32.xlu0 %v220, 32
    %v224 = vpop.permute.xlu0 %223
    %v227 = vmul.f32 %v199, %v222
    %v228 = vmul.f32 %v214, %v224
    %231 = vrot.lane.b32.xlu0 %v217, 64
    %v232 = vpop.permute.xlu0 %231
    %233 = vrot.lane.b32.xlu0 %v218, 64
    %v234 = vpop.permute.xlu0 %233
    %v237 = vmul.f32 %v199, %v232
    %v238 = vmul.f32 %v214, %v234
    %241 = vrot.lane.b32.xlu0 %v237, 32
    %v242 = vpop.permute.xlu0 %241
    %243 = vrot.lane.b32.xlu0 %v238, 32
    %v244 = vpop.permute.xlu0 %243
    %v247 = vadd.f32 %v227, %v242
    %v248 = vadd.f32 %v228, %v244
    %v249 = vtanh.pop %v247
    %v250 = vtanh.pop %v248
    %253 = vrot.lane.b32.xlu0 %v249, 64
    %v254 = vpop.permute.xlu0 %253
    %255 = vrot.lane.b32.xlu0 %v250, 64
    %v256 = vpop.permute.xlu0 %255
    %v259 = vmul.f32 %v199, %v254
    %v260 = vmul.f32 %v214, %v256
    %vm263 = vcmask 1044484
    %v264 = vsel %vm263, %v259, %v259
    %vm265 = vcmask 1046534
    %v266 = vsel %vm265, %v259, %v264
    %v267 = vrot.slane %v260, 7
    %vm268 = vcmask 1041409
    %v269 = vsel %vm268, %v267, %v266
    %vm270 = vcmask 1043459
    %v271 = vsel %vm270, %v267, %v269
    %vm272 = vcmask 1045509
    %v273 = vsel %vm272, %v267, %v271
    %vm274 = vcmask 1047559
    %v275 = vsel %vm274, %v267, %v273
    %276 = vrot.lane.b32.xlu0 %v275, 32
    %v277 = vpop.permute.xlu0 %276
    %vm279 = vcmask 254976
    %280 = vst.msk [vmem:[#allocation11] sm:$0x3] %vm279, %v277
    %v281 = vsel %vm268, %v267, %v259
    %282 = vrot.lane.b32.xlu0 %v281, 32
    %v283 = vpop.permute.xlu0 %282
    %v284 = vsel %vm112, %v283, 0
    %286 = vmatpush.msra.mxu0 0.0
    %287 = vmatpush.msra.mxu0 0.0
    %288 = vmatpush.msra.mxu0 0.0
    %289 = vmatpush.msra.mxu0 0.0
    %290 = vmatpush.msra.mxu0 0.0
    %291 = vmatpush.msra.mxu0 0.0
    %292 = vmatpush.msra.mxu0 0.0
    %293 = vmatpush.msra.mxu0 0.0
    %294 = vmatpush.msra.mxu0 0.0
    %295 = vmatpush.msra.mxu0 0.0
    %296 = vmatpush.msra.mxu0 0.0
    %297 = vmatpush.msra.mxu0 0.0
    %298 = vmatpush.msra.mxu0 %v145
    %299 = vmatpush.msra.mxu0 %v144
    %300 = vmatpush.msra.mxu0 %v143
    %301 = vmatpush.msra.mxu0 %v142
    %302 = vmatmul.f32.gmra.mxu0 %v284
    %v303 = vpop.f32.mrf.mxu0
    %v304 = vadd.f32 0.0, %v303
    %305 = vdwg.mxu0
    %v307 = vrot.slane %v304, 7
    %v310 = vadd.f32 %v137, %v307
    %v311 = vadd.f32 %v140, %v304
    %v312 = vxor.u32 %v310, 2147483648
    %v313 = vxor.u32 %v311, 2147483648
    %v314 = vmul.f32 %v312, 1.442695
    %v315 = vpow.pop %v314
    %v316 = vmul.f32 %v313, 1.442695
    %v317 = vpow.pop %v316
    %v318 = vadd.f32 %v315, 1.0
    %v319 = vadd.f32 %v317, 1.0
    %v320 = vrcp.pop %v318
    %v321 = vmul.f32 %v318, %v320
    %v322 = vsub.f32 1.0, %v321
    %v323 = vmul.f32 %v320, %v322
    %v324 = vadd.f32 %v320, %v323
    %vm325 = vweird.f32 %v318
    %vm326 = vweird.f32 %v320
    %vm327 = vmor %vm325, %vm326
    %v328 = vsel %vm327, %v320, %v324
    %v329 = vand.u32 2147483647, %v318
    %vm330 = vcmp.eq.f32.partialorder %v329, 8.507059e+37
    %v331 = vand.u32 %v318, 2147483648
    %v332 = vor.u32 1.1754944e-38, %v331
    %v333 = vsel %vm330, %v332, %v328
    %v334 = vmul.f32 1.0, %v333
    %v335 = vrcp.pop %v319
    %v336 = vmul.f32 %v319, %v335
    %v337 = vsub.f32 1.0, %v336
    %v338 = vmul.f32 %v335, %v337
    %v339 = vadd.f32 %v335, %v338
    %vm340 = vweird.f32 %v319
    %vm341 = vweird.f32 %v335
    %vm342 = vmor %vm340, %vm341
    %v343 = vsel %vm342, %v335, %v339
    %v344 = vand.u32 2147483647, %v319
    %vm345 = vcmp.eq.f32.partialorder %v344, 8.507059e+37
    %v346 = vand.u32 %v319, 2147483648
    %v347 = vor.u32 1.1754944e-38, %v346
    %v348 = vsel %vm345, %v347, %v343
    %v349 = vmul.f32 1.0, %v348
    %v350 = vmul.f32 %v334, 2.0
    %v351 = vmul.f32 %v349, 2.0
    %v352 = vsub.f32 %v350, 1.0
    %v353 = vsub.f32 %v351, 1.0
    %v356 = vrot.slane %v247, 7
    %v357 = vrot.slane %v248, 7
    %v360 = vmul.f32 %v334, %v356
    %v361 = vmul.f32 %v349, %v357
    %364 = vrot.lane.b32.xlu0 %v352, 64
    %v365 = vpop.permute.xlu0 %364
    %366 = vrot.lane.b32.xlu0 %v353, 64
    %v367 = vpop.permute.xlu0 %366
    %v370 = vmul.f32 %v334, %v365
    %v371 = vmul.f32 %v349, %v367
    %374 = vrot.lane.b32.xlu0 %v370, 32
    %v375 = vpop.permute.xlu0 %374
    %376 = vrot.lane.b32.xlu0 %v371, 32
    %v377 = vpop.permute.xlu0 %376
    %v380 = vadd.f32 %v360, %v375
    %v381 = vadd.f32 %v361, %v377
    %v382 = vtanh.pop %v380
    %v383 = vtanh.pop %v381
    %386 = vrot.lane.b32.xlu0 %v382, 64
    %v387 = vpop.permute.xlu0 %386
    %388 = vrot.lane.b32.xlu0 %v383, 64
    %v389 = vpop.permute.xlu0 %388
    %v392 = vmul.f32 %v334, %v387
    %v393 = vmul.f32 %v349, %v389
    %v396 = vrot.slane %v392, 1
    %v397 = vsel %vm263, %v396, %v396
    %v398 = vsel %vm265, %v396, %v397
    %v399 = vsel %vm268, %v393, %v398
    %v400 = vsel %vm270, %v393, %v399
    %v401 = vsel %vm272, %v393, %v400
    %v402 = vsel %vm274, %v393, %v401
    %403 = vrot.lane.b32.xlu0 %v402, 64
    %v404 = vpop.permute.xlu0 %403
    %vm406 = vcmask 517376
    %407 = vst.msk [vmem:[#allocation11] sm:$0x3] %vm406, %v404
    %v408 = vsel %vm268, %v393, %v396
    %409 = vrot.lane.b32.xlu0 %v408, 32
    %v410 = vpop.permute.xlu0 %409
    %v411 = vsel %vm112, %v410, 0
    %413 = vmatpush.msra.mxu0 0.0
    %414 = vmatpush.msra.mxu0 0.0
    %415 = vmatpush.msra.mxu0 0.0
    %416 = vmatpush.msra.mxu0 0.0
    %417 = vmatpush.msra.mxu0 0.0
    %418 = vmatpush.msra.mxu0 0.0
    %419 = vmatpush.msra.mxu0 0.0
    %420 = vmatpush.msra.mxu0 0.0
    %421 = vmatpush.msra.mxu0 0.0
    %422 = vmatpush.msra.mxu0 0.0
    %423 = vmatpush.msra.mxu0 0.0
    %424 = vmatpush.msra.mxu0 0.0
    %425 = vmatpush.msra.mxu0 %v145
    %426 = vmatpush.msra.mxu0 %v144
    %427 = vmatpush.msra.mxu0 %v143
    %428 = vmatpush.msra.mxu0 %v142
    %429 = vmatmul.f32.gmra.mxu0 %v411
    %v430 = vpop.f32.mrf.mxu0
    %v431 = vadd.f32 0.0, %v430
    %432 = vdwg.mxu0
    %v434 = vrot.slane %v431, 6
    %v435 = vrot.slane %v431, 7
    %v438 = vadd.f32 %v137, %v434
    %v439 = vadd.f32 %v140, %v435
    %v440 = vxor.u32 %v438, 2147483648
    %v441 = vxor.u32 %v439, 2147483648
    %v442 = vmul.f32 %v440, 1.442695
    %v443 = vpow.pop %v442
    %v444 = vmul.f32 %v441, 1.442695
    %v445 = vpow.pop %v444
    %v446 = vadd.f32 %v443, 1.0
    %v447 = vadd.f32 %v445, 1.0
    %v448 = vrcp.pop %v446
    %v449 = vmul.f32 %v446, %v448
    %v450 = vsub.f32 1.0, %v449
    %v451 = vmul.f32 %v448, %v450
    %v452 = vadd.f32 %v448, %v451
    %vm453 = vweird.f32 %v446
    %vm454 = vweird.f32 %v448
    %vm455 = vmor %vm453, %vm454
    %v456 = vsel %vm455, %v448, %v452
    %v457 = vand.u32 2147483647, %v446
    %vm458 = vcmp.eq.f32.partialorder %v457, 8.507059e+37
    %v459 = vand.u32 %v446, 2147483648
    %v460 = vor.u32 1.1754944e-38, %v459
    %v461 = vsel %vm458, %v460, %v456
    %v462 = vmul.f32 1.0, %v461
    %v463 = vrcp.pop %v447
    %v464 = vmul.f32 %v447, %v463
    %v465 = vsub.f32 1.0, %v464
    %v466 = vmul.f32 %v463, %v465
    %v467 = vadd.f32 %v463, %v466
    %vm468 = vweird.f32 %v447
    %vm469 = vweird.f32 %v463
    %vm470 = vmor %vm468, %vm469
    %v471 = vsel %vm470, %v463, %v467
    %v472 = vand.u32 2147483647, %v447
    %vm473 = vcmp.eq.f32.partialorder %v472, 8.507059e+37
    %v474 = vand.u32 %v447, 2147483648
    %v475 = vor.u32 1.1754944e-38, %v474
    %v476 = vsel %vm473, %v475, %v471
    %v477 = vmul.f32 1.0, %v476
    %v478 = vmul.f32 %v462, 2.0
    %v479 = vmul.f32 %v477, 2.0
    %v480 = vsub.f32 %v478, 1.0
    %v481 = vsub.f32 %v479, 1.0
    %v484 = vrot.slane %v380, 7
    %v485 = vrot.slane %v381, 7
    %v488 = vmul.f32 %v462, %v484
    %v489 = vmul.f32 %v477, %v485
    %492 = vrot.lane.b32.xlu0 %v480, 64
    %v493 = vpop.permute.xlu0 %492
    %494 = vrot.lane.b32.xlu0 %v481, 64
    %v495 = vpop.permute.xlu0 %494
    %v498 = vmul.f32 %v462, %v493
    %v499 = vmul.f32 %v477, %v495
    %502 = vrot.lane.b32.xlu0 %v498, 32
    %v503 = vpop.permute.xlu0 %502
    %504 = vrot.lane.b32.xlu0 %v499, 32
    %v505 = vpop.permute.xlu0 %504
    %v508 = vadd.f32 %v488, %v503
    %v509 = vadd.f32 %v489, %v505
    %v510 = vtanh.pop %v508
    %v511 = vtanh.pop %v509
    %514 = vrot.lane.b32.xlu0 %v510, 64
    %v515 = vpop.permute.xlu0 %514
    %516 = vrot.lane.b32.xlu0 %v511, 64
    %v517 = vpop.permute.xlu0 %516
    %v520 = vmul.f32 %v462, %v515
    %v521 = vmul.f32 %v477, %v517
    %524 = vst.sshfl [vmem:[#allocation1] sm:$0xff pattern:$0x73625140] %v520
    %s525 = scalar_lea.vmem [#allocation1], 1
    %v526 = vld [vmem:[%s525] ss:$4 sm:$0xff]
    %527 = vst.sshfl [vmem:[#allocation1 + $0x20] sm:$0xff pattern:$0x73625140] %v521
    %s528 = scalar_lea.vmem [#allocation1], 33
    %v529 = vld [vmem:[%s528] ss:$4 sm:$0xff]
    %v530 = vsel %vm263, %v526, %v526
    %v531 = vsel %vm265, %v526, %v530
    %v532 = vrot.slane %v529, 7
    %v533 = vsel %vm268, %v532, %v531
    %v534 = vsel %vm270, %v532, %v533
    %v535 = vsel %vm272, %v532, %v534
    %v536 = vsel %vm274, %v532, %v535
    %537 = vrot.lane.b32.xlu0 %v536, 96
    %v538 = vpop.permute.xlu0 %537
    %vm540 = vcmask 779776
    %541 = vst.msk [vmem:[#allocation11] sm:$0x3] %vm540, %v538
    %v542 = vrot.slane %v520, 2
    %v543 = vrot.slane %v521, 1
    %v544 = vsel %vm268, %v543, %v542
    %545 = vrot.lane.b32.xlu0 %v544, 32
    %v546 = vpop.permute.xlu0 %545
    %v547 = vsel %vm112, %v546, 0
    %549 = vmatpush.msra.mxu0 0.0
    %550 = vmatpush.msra.mxu0 0.0
    %551 = vmatpush.msra.mxu0 0.0
    %552 = vmatpush.msra.mxu0 0.0
    %553 = vmatpush.msra.mxu0 0.0
    %554 = vmatpush.msra.mxu0 0.0
    %555 = vmatpush.msra.mxu0 0.0
    %556 = vmatpush.msra.mxu0 0.0
    %557 = vmatpush.msra.mxu0 0.0
    %558 = vmatpush.msra.mxu0 0.0
    %559 = vmatpush.msra.mxu0 0.0
    %560 = vmatpush.msra.mxu0 0.0
    %561 = vmatpush.msra.mxu0 %v145
    %562 = vmatpush.msra.mxu0 %v144
    %563 = vmatpush.msra.mxu0 %v143
    %564 = vmatpush.msra.mxu0 %v142
    %565 = vmatmul.f32.gmra.mxu0 %v547
    %v566 = vpop.f32.mrf.mxu0
    %v567 = vadd.f32 0.0, %v566
    %568 = vdwg.mxu0
    %v570 = vrot.slane %v567, 5
    %v571 = vrot.slane %v567, 6
    %v574 = vadd.f32 %v137, %v570
    %v575 = vadd.f32 %v140, %v571
    %v576 = vxor.u32 %v574, 2147483648
    %v577 = vxor.u32 %v575, 2147483648
    %v578 = vmul.f32 %v576, 1.442695
    %v579 = vpow.pop %v578
    %v580 = vmul.f32 %v577, 1.442695
    %v581 = vpow.pop %v580
    %v582 = vadd.f32 %v579, 1.0
    %v583 = vadd.f32 %v581, 1.0
    %v584 = vrcp.pop %v582
    %v585 = vmul.f32 %v582, %v584
    %v586 = vsub.f32 1.0, %v585
    %v587 = vmul.f32 %v584, %v586
    %v588 = vadd.f32 %v584, %v587
    %vm589 = vweird.f32 %v582
    %vm590 = vweird.f32 %v584
    %vm591 = vmor %vm589, %vm590
    %v592 = vsel %vm591, %v584, %v588
    %v593 = vand.u32 2147483647, %v582
    %vm594 = vcmp.eq.f32.partialorder %v593, 8.507059e+37
    %v595 = vand.u32 %v582, 2147483648
    %v596 = vor.u32 1.1754944e-38, %v595
    %v597 = vsel %vm594, %v596, %v592
    %v598 = vmul.f32 1.0, %v597
    %v599 = vrcp.pop %v583
    %v600 = vmul.f32 %v583, %v599
    %v601 = vsub.f32 1.0, %v600
    %v602 = vmul.f32 %v599, %v601
    %v603 = vadd.f32 %v599, %v602
    %vm604 = vweird.f32 %v583
    %vm605 = vweird.f32 %v599
    %vm606 = vmor %vm604, %vm605
    %v607 = vsel %vm606, %v599, %v603
    %v608 = vand.u32 2147483647, %v583
    %vm609 = vcmp.eq.f32.partialorder %v608, 8.507059e+37
    %v610 = vand.u32 %v583, 2147483648
    %v611 = vor.u32 1.1754944e-38, %v610
    %v612 = vsel %vm609, %v611, %v607
    %v613 = vmul.f32 1.0, %v612
    %v614 = vmul.f32 %v598, 2.0
    %v615 = vmul.f32 %v613, 2.0
    %v616 = vsub.f32 %v614, 1.0
    %v617 = vsub.f32 %v615, 1.0
    %v620 = vrot.slane %v508, 7
    %v621 = vrot.slane %v509, 7
    %v624 = vmul.f32 %v598, %v620
    %v625 = vmul.f32 %v613, %v621
    %628 = vrot.lane.b32.xlu0 %v616, 64
    %v629 = vpop.permute.xlu0 %628
    %630 = vrot.lane.b32.xlu0 %v617, 64
    %v631 = vpop.permute.xlu0 %630
    %v634 = vmul.f32 %v598, %v629
    %v635 = vmul.f32 %v613, %v631
    %638 = vrot.lane.b32.xlu0 %v634, 32
    %v639 = vpop.permute.xlu0 %638
    %640 = vrot.lane.b32.xlu0 %v635, 32
    %v641 = vpop.permute.xlu0 %640
    %v644 = vadd.f32 %v624, %v639
    %v645 = vadd.f32 %v625, %v641
    %v646 = vtanh.pop %v644
    %v647 = vtanh.pop %v645
    %650 = vrot.lane.b32.xlu0 %v646, 64
    %v651 = vpop.permute.xlu0 %650
    %652 = vrot.lane.b32.xlu0 %v647, 64
    %v653 = vpop.permute.xlu0 %652
    %v656 = vmul.f32 %v598, %v651
    %v657 = vmul.f32 %v613, %v653
    %660 = vst.sshfl [vmem:[#allocation1] sm:$0xff pattern:$0x73625140] %v656
    %s661 = scalar_lea.vmem [#allocation1], 1
    %v662 = vld [vmem:[%s661] ss:$4 sm:$0xff]
    %663 = vst.sshfl [vmem:[#allocation1 + $0x20] sm:$0xff pattern:$0x73625140] %v657
    %s664 = scalar_lea.vmem [#allocation1], 33
    %v665 = vld [vmem:[%s664] ss:$4 sm:$0xff]
    %v666 = vrot.slane %v662, 1
    %v667 = vsel %vm263, %v666, %v666
    %v668 = vsel %vm265, %v666, %v667
    %v669 = vsel %vm268, %v665, %v668
    %v670 = vsel %vm270, %v665, %v669
    %v671 = vsel %vm272, %v665, %v670
    %v672 = vsel %vm274, %v665, %v671
    %vm674 = vcmask 1042176
    %675 = vst.msk [vmem:[#allocation11] sm:$0x3] %vm674, %v672
    %v676 = vrot.slane %v656, 3
    %v677 = vrot.slane %v657, 2
    %v678 = vsel %vm268, %v677, %v676
    %679 = vrot.lane.b32.xlu0 %v678, 32
    %v680 = vpop.permute.xlu0 %679
    %v681 = vsel %vm112, %v680, 0
    %683 = vmatpush.msra.mxu0 0.0
    %684 = vmatpush.msra.mxu0 0.0
    %685 = vmatpush.msra.mxu0 0.0
    %686 = vmatpush.msra.mxu0 0.0
    %687 = vmatpush.msra.mxu0 0.0
    %688 = vmatpush.msra.mxu0 0.0
    %689 = vmatpush.msra.mxu0 0.0
    %690 = vmatpush.msra.mxu0 0.0
    %691 = vmatpush.msra.mxu0 0.0
    %692 = vmatpush.msra.mxu0 0.0
    %693 = vmatpush.msra.mxu0 0.0
    %694 = vmatpush.msra.mxu0 0.0
    %695 = vmatpush.msra.mxu0 %v145
    %696 = vmatpush.msra.mxu0 %v144
    %697 = vmatpush.msra.mxu0 %v143
    %698 = vmatpush.msra.mxu0 %v142
    %699 = vmatmul.f32.gmra.mxu0 %v681
    %v700 = vpop.f32.mrf.mxu0
    %v701 = vadd.f32 0.0, %v700
    %702 = vdwg.mxu0
    %v704 = vrot.slane %v701, 4
    %v705 = vrot.slane %v701, 5
    %v708 = vadd.f32 %v137, %v704
    %v709 = vadd.f32 %v140, %v705
    %v710 = vxor.u32 %v708, 2147483648
    %v711 = vxor.u32 %v709, 2147483648
    %v712 = vmul.f32 %v710, 1.442695
    %v713 = vpow.pop %v712
    %v714 = vmul.f32 %v711, 1.442695
    %v715 = vpow.pop %v714
    %v716 = vadd.f32 %v713, 1.0
    %v717 = vadd.f32 %v715, 1.0
    %v718 = vrcp.pop %v716
    %v719 = vmul.f32 %v716, %v718
    %v720 = vsub.f32 1.0, %v719
    %v721 = vmul.f32 %v718, %v720
    %v722 = vadd.f32 %v718, %v721
    %vm723 = vweird.f32 %v716
    %vm724 = vweird.f32 %v718
    %vm725 = vmor %vm723, %vm724
    %v726 = vsel %vm725, %v718, %v722
    %v727 = vand.u32 2147483647, %v716
    %vm728 = vcmp.eq.f32.partialorder %v727, 8.507059e+37
    %v729 = vand.u32 %v716, 2147483648
    %v730 = vor.u32 1.1754944e-38, %v729
    %v731 = vsel %vm728, %v730, %v726
    %v732 = vmul.f32 1.0, %v731
    %v733 = vrcp.pop %v717
    %v734 = vmul.f32 %v717, %v733
    %v735 = vsub.f32 1.0, %v734
    %v736 = vmul.f32 %v733, %v735
    %v737 = vadd.f32 %v733, %v736
    %vm738 = vweird.f32 %v717
    %vm739 = vweird.f32 %v733
    %vm740 = vmor %vm738, %vm739
    %v741 = vsel %vm740, %v733, %v737
    %v742 = vand.u32 2147483647, %v717
    %vm743 = vcmp.eq.f32.partialorder %v742, 8.507059e+37
    %v744 = vand.u32 %v717, 2147483648
    %v745 = vor.u32 1.1754944e-38, %v744
    %v746 = vsel %vm743, %v745, %v741
    %v747 = vmul.f32 1.0, %v746
    %v748 = vmul.f32 %v732, 2.0
    %v749 = vmul.f32 %v747, 2.0
    %v750 = vsub.f32 %v748, 1.0
    %v751 = vsub.f32 %v749, 1.0
    %v754 = vrot.slane %v644, 7
    %v755 = vrot.slane %v645, 7
    %v758 = vmul.f32 %v732, %v754
    %v759 = vmul.f32 %v747, %v755
    %762 = vrot.lane.b32.xlu0 %v750, 64
    %v763 = vpop.permute.xlu0 %762
    %764 = vrot.lane.b32.xlu0 %v751, 64
    %v765 = vpop.permute.xlu0 %764
    %v768 = vmul.f32 %v732, %v763
    %v769 = vmul.f32 %v747, %v765
    %772 = vrot.lane.b32.xlu0 %v768, 32
    %v773 = vpop.permute.xlu0 %772
    %774 = vrot.lane.b32.xlu0 %v769, 32
    %v775 = vpop.permute.xlu0 %774
    %v778 = vadd.f32 %v758, %v773
    %v779 = vadd.f32 %v759, %v775
    %v780 = vtanh.pop %v778
    %v781 = vtanh.pop %v779
    %784 = vrot.lane.b32.xlu0 %v780, 64
    %v785 = vpop.permute.xlu0 %784
    %786 = vrot.lane.b32.xlu0 %v781, 64
    %v787 = vpop.permute.xlu0 %786
    %v790 = vmul.f32 %v732, %v785
    %v791 = vmul.f32 %v747, %v787
    %794 = vst.sshfl [vmem:[#allocation1] sm:$0xff pattern:$0x73625140] %v790
    %s795 = scalar_lea.vmem [#allocation1], 2
    %v796 = vld [vmem:[%s795] ss:$4 sm:$0xff]
    %797 = vst.sshfl [vmem:[#allocation1 + $0x20] sm:$0xff pattern:$0x73625140] %v791
    %s798 = scalar_lea.vmem [#allocation1], 34
    %v799 = vld [vmem:[%s798] ss:$4 sm:$0xff]
    %v800 = vsel %vm263, %v796, %v796
    %v801 = vsel %vm265, %v796, %v800
    %v802 = vrot.slane %v799, 7
    %v803 = vsel %vm268, %v802, %v801
    %v804 = vsel %vm270, %v802, %v803
    %v805 = vsel %vm272, %v802, %v804
    %v806 = vsel %vm274, %v802, %v805
    %807 = vrot.lane.b32.xlu0 %v806, 32
    %v808 = vpop.permute.xlu0 %807
    %810 = vst.msk [vmem:[#allocation11 + $0x2] sm:$0x3] %vm279, %v808
    %v811 = vrot.slane %v790, 4
    %v812 = vrot.slane %v791, 3
    %v813 = vsel %vm268, %v812, %v811
    %814 = vrot.lane.b32.xlu0 %v813, 32
    %v815 = vpop.permute.xlu0 %814
    %v816 = vsel %vm112, %v815, 0
    %818 = vmatpush.msra.mxu0 0.0
    %819 = vmatpush.msra.mxu0 0.0
    %820 = vmatpush.msra.mxu0 0.0
    %821 = vmatpush.msra.mxu0 0.0
    %822 = vmatpush.msra.mxu0 0.0
    %823 = vmatpush.msra.mxu0 0.0
    %824 = vmatpush.msra.mxu0 0.0
    %825 = vmatpush.msra.mxu0 0.0
    %826 = vmatpush.msra.mxu0 0.0
    %827 = vmatpush.msra.mxu0 0.0
    %828 = vmatpush.msra.mxu0 0.0
    %829 = vmatpush.msra.mxu0 0.0
    %830 = vmatpush.msra.mxu0 %v145
    %831 = vmatpush.msra.mxu0 %v144
    %832 = vmatpush.msra.mxu0 %v143
    %833 = vmatpush.msra.mxu0 %v142
    %834 = vmatmul.f32.gmra.mxu0 %v816
    %v835 = vpop.f32.mrf.mxu0
    %v836 = vadd.f32 0.0, %v835
    %837 = vdwg.mxu0
    %v839 = vrot.slane %v836, 3
    %v840 = vrot.slane %v836, 4
    %v843 = vadd.f32 %v137, %v839
    %v844 = vadd.f32 %v140, %v840
    %v845 = vxor.u32 %v843, 2147483648
    %v846 = vxor.u32 %v844, 2147483648
    %v847 = vmul.f32 %v845, 1.442695
    %v848 = vpow.pop %v847
    %v849 = vmul.f32 %v846, 1.442695
    %v850 = vpow.pop %v849
    %v851 = vadd.f32 %v848, 1.0
    %v852 = vadd.f32 %v850, 1.0
    %v853 = vrcp.pop %v851
    %v854 = vmul.f32 %v851, %v853
    %v855 = vsub.f32 1.0, %v854
    %v856 = vmul.f32 %v853, %v855
    %v857 = vadd.f32 %v853, %v856
    %vm858 = vweird.f32 %v851
    %vm859 = vweird.f32 %v853
    %vm860 = vmor %vm858, %vm859
    %v861 = vsel %vm860, %v853, %v857
    %v862 = vand.u32 2147483647, %v851
    %vm863 = vcmp.eq.f32.partialorder %v862, 8.507059e+37
    %v864 = vand.u32 %v851, 2147483648
    %v865 = vor.u32 1.1754944e-38, %v864
    %v866 = vsel %vm863, %v865, %v861
    %v867 = vmul.f32 1.0, %v866
    %v868 = vrcp.pop %v852
    %v869 = vmul.f32 %v852, %v868
    %v870 = vsub.f32 1.0, %v869
    %v871 = vmul.f32 %v868, %v870
    %v872 = vadd.f32 %v868, %v871
    %vm873 = vweird.f32 %v852
    %vm874 = vweird.f32 %v868
    %vm875 = vmor %vm873, %vm874
    %v876 = vsel %vm875, %v868, %v872
    %v877 = vand.u32 2147483647, %v852
    %vm878 = vcmp.eq.f32.partialorder %v877, 8.507059e+37
    %v879 = vand.u32 %v852, 2147483648
    %v880 = vor.u32 1.1754944e-38, %v879
    %v881 = vsel %vm878, %v880, %v876
    %v882 = vmul.f32 1.0, %v881
    %v883 = vmul.f32 %v867, 2.0
    %v884 = vmul.f32 %v882, 2.0
    %v885 = vsub.f32 %v883, 1.0
    %v886 = vsub.f32 %v884, 1.0
    %v889 = vrot.slane %v778, 7
    %v890 = vrot.slane %v779, 7
    %v893 = vmul.f32 %v867, %v889
    %v894 = vmul.f32 %v882, %v890
    %897 = vrot.lane.b32.xlu0 %v885, 64
    %v898 = vpop.permute.xlu0 %897
    %899 = vrot.lane.b32.xlu0 %v886, 64
    %v900 = vpop.permute.xlu0 %899
    %v903 = vmul.f32 %v867, %v898
    %v904 = vmul.f32 %v882, %v900
    %907 = vrot.lane.b32.xlu0 %v903, 32
    %v908 = vpop.permute.xlu0 %907
    %909 = vrot.lane.b32.xlu0 %v904, 32
    %v910 = vpop.permute.xlu0 %909
    %v913 = vadd.f32 %v893, %v908
    %v914 = vadd.f32 %v894, %v910
    %v915 = vtanh.pop %v913
    %v916 = vtanh.pop %v914
    %919 = vrot.lane.b32.xlu0 %v915, 64
    %v920 = vpop.permute.xlu0 %919
    %921 = vrot.lane.b32.xlu0 %v916, 64
    %v922 = vpop.permute.xlu0 %921
    %v925 = vmul.f32 %v867, %v920
    %v926 = vmul.f32 %v882, %v922
    %929 = vst.sshfl [vmem:[#allocation1] sm:$0xff pattern:$0x73625140] %v925
    %s930 = scalar_lea.vmem [#allocation1], 2
    %v931 = vld [vmem:[%s930] ss:$4 sm:$0xff]
    %932 = vst.sshfl [vmem:[#allocation1 + $0x20] sm:$0xff pattern:$0x73625140] %v926
    %s933 = scalar_lea.vmem [#allocation1], 34
    %v934 = vld [vmem:[%s933] ss:$4 sm:$0xff]
    %v935 = vrot.slane %v931, 1
    %v936 = vsel %vm263, %v935, %v935
    %v937 = vsel %vm265, %v935, %v936
    %v938 = vsel %vm268, %v934, %v937
    %v939 = vsel %vm270, %v934, %v938
    %v940 = vsel %vm272, %v934, %v939
    %v941 = vsel %vm274, %v934, %v940
    %942 = vrot.lane.b32.xlu0 %v941, 64
    %v943 = vpop.permute.xlu0 %942
    %945 = vst.msk [vmem:[#allocation11 + $0x2] sm:$0x3] %vm406, %v943
    %v946 = vrot.slane %v925, 5
    %v947 = vrot.slane %v926, 4
    %v948 = vsel %vm268, %v947, %v946
    %949 = vrot.lane.b32.xlu0 %v948, 32
    %v950 = vpop.permute.xlu0 %949
    %v951 = vsel %vm112, %v950, 0
    %953 = vmatpush.msra.mxu0 0.0
    %954 = vmatpush.msra.mxu0 0.0
    %955 = vmatpush.msra.mxu0 0.0
    %956 = vmatpush.msra.mxu0 0.0
    %957 = vmatpush.msra.mxu0 0.0
    %958 = vmatpush.msra.mxu0 0.0
    %959 = vmatpush.msra.mxu0 0.0
    %960 = vmatpush.msra.mxu0 0.0
    %961 = vmatpush.msra.mxu0 0.0
    %962 = vmatpush.msra.mxu0 0.0
    %963 = vmatpush.msra.mxu0 0.0
    %964 = vmatpush.msra.mxu0 0.0
    %965 = vmatpush.msra.mxu0 %v145
    %966 = vmatpush.msra.mxu0 %v144
    %967 = vmatpush.msra.mxu0 %v143
    %968 = vmatpush.msra.mxu0 %v142
    %969 = vmatmul.f32.gmra.mxu0 %v951
    %v970 = vpop.f32.mrf.mxu0
    %v971 = vadd.f32 0.0, %v970
    %972 = vdwg.mxu0
    %v974 = vrot.slane %v971, 2
    %v975 = vrot.slane %v971, 3
    %v978 = vadd.f32 %v137, %v974
    %v979 = vadd.f32 %v140, %v975
    %v980 = vxor.u32 %v978, 2147483648
    %v981 = vxor.u32 %v979, 2147483648
    %v982 = vmul.f32 %v980, 1.442695
    %v983 = vpow.pop %v982
    %v984 = vmul.f32 %v981, 1.442695
    %v985 = vpow.pop %v984
    %v986 = vadd.f32 %v983, 1.0
    %v987 = vadd.f32 %v985, 1.0
    %v988 = vrcp.pop %v986
    %v989 = vmul.f32 %v986, %v988
    %v990 = vsub.f32 1.0, %v989
    %v991 = vmul.f32 %v988, %v990
    %v992 = vadd.f32 %v988, %v991
    %vm993 = vweird.f32 %v986
    %vm994 = vweird.f32 %v988
    %vm995 = vmor %vm993, %vm994
    %v996 = vsel %vm995, %v988, %v992
    %v997 = vand.u32 2147483647, %v986
    %vm998 = vcmp.eq.f32.partialorder %v997, 8.507059e+37
    %v999 = vand.u32 %v986, 2147483648
    %v1000 = vor.u32 1.1754944e-38, %v999
    %v1001 = vsel %vm998, %v1000, %v996
    %v1002 = vmul.f32 1.0, %v1001
    %v1003 = vrcp.pop %v987
    %v1004 = vmul.f32 %v987, %v1003
    %v1005 = vsub.f32 1.0, %v1004
    %v1006 = vmul.f32 %v1003, %v1005
    %v1007 = vadd.f32 %v1003, %v1006
    %vm1008 = vweird.f32 %v987
    %vm1009 = vweird.f32 %v1003
    %vm1010 = vmor %vm1008, %vm1009
    %v1011 = vsel %vm1010, %v1003, %v1007
    %v1012 = vand.u32 2147483647, %v987
    %vm1013 = vcmp.eq.f32.partialorder %v1012, 8.507059e+37
    %v1014 = vand.u32 %v987, 2147483648
    %v1015 = vor.u32 1.1754944e-38, %v1014
    %v1016 = vsel %vm1013, %v1015, %v1011
    %v1017 = vmul.f32 1.0, %v1016
    %v1018 = vmul.f32 %v1002, 2.0
    %v1019 = vmul.f32 %v1017, 2.0
    %v1020 = vsub.f32 %v1018, 1.0
    %v1021 = vsub.f32 %v1019, 1.0
    %v1024 = vrot.slane %v913, 7
    %v1025 = vrot.slane %v914, 7
    %v1028 = vmul.f32 %v1002, %v1024
    %v1029 = vmul.f32 %v1017, %v1025
    %1032 = vrot.lane.b32.xlu0 %v1020, 64
    %v1033 = vpop.permute.xlu0 %1032
    %1034 = vrot.lane.b32.xlu0 %v1021, 64
    %v1035 = vpop.permute.xlu0 %1034
    %v1038 = vmul.f32 %v1002, %v1033
    %v1039 = vmul.f32 %v1017, %v1035
    %1042 = vrot.lane.b32.xlu0 %v1038, 32
    %v1043 = vpop.permute.xlu0 %1042
    %1044 = vrot.lane.b32.xlu0 %v1039, 32
    %v1045 = vpop.permute.xlu0 %1044
    %v1048 = vadd.f32 %v1028, %v1043
    %v1049 = vadd.f32 %v1029, %v1045
    %v1050 = vtanh.pop %v1048
    %v1051 = vtanh.pop %v1049
    %1054 = vrot.lane.b32.xlu0 %v1050, 64
    %v1055 = vpop.permute.xlu0 %1054
    %1056 = vrot.lane.b32.xlu0 %v1051, 64
    %v1057 = vpop.permute.xlu0 %1056
    %v1060 = vmul.f32 %v1002, %v1055
    %v1061 = vmul.f32 %v1017, %v1057
    %1064 = vst.sshfl [vmem:[#allocation1] sm:$0xff pattern:$0x73625140] %v1060
    %s1065 = scalar_lea.vmem [#allocation1], 3
    %v1066 = vld [vmem:[%s1065] ss:$4 sm:$0xff]
    %1067 = vst.sshfl [vmem:[#allocation1 + $0x20] sm:$0xff pattern:$0x73625140] %v1061
    %s1068 = scalar_lea.vmem [#allocation1], 35
    %v1069 = vld [vmem:[%s1068] ss:$4 sm:$0xff]
    %v1070 = vsel %vm263, %v1066, %v1066
    %v1071 = vsel %vm265, %v1066, %v1070
    %v1072 = vrot.slane %v1069, 7
    %v1073 = vsel %vm268, %v1072, %v1071
    %v1074 = vsel %vm270, %v1072, %v1073
    %v1075 = vsel %vm272, %v1072, %v1074
    %v1076 = vsel %vm274, %v1072, %v1075
    %1077 = vrot.lane.b32.xlu0 %v1076, 96
    %v1078 = vpop.permute.xlu0 %1077
    %1080 = vst.msk [vmem:[#allocation11 + $0x2] sm:$0x3] %vm540, %v1078
    %v1081 = vrot.slane %v1060, 6
    %v1082 = vrot.slane %v1061, 5
    %v1083 = vsel %vm268, %v1082, %v1081
    %1084 = vrot.lane.b32.xlu0 %v1083, 32
    %v1085 = vpop.permute.xlu0 %1084
    %v1086 = vsel %vm112, %v1085, 0
    %1088 = vmatpush.msra.mxu0 0.0
    %1089 = vmatpush.msra.mxu0 0.0
    %1090 = vmatpush.msra.mxu0 0.0
    %1091 = vmatpush.msra.mxu0 0.0
    %1092 = vmatpush.msra.mxu0 0.0
    %1093 = vmatpush.msra.mxu0 0.0
    %1094 = vmatpush.msra.mxu0 0.0
    %1095 = vmatpush.msra.mxu0 0.0
    %1096 = vmatpush.msra.mxu0 0.0
    %1097 = vmatpush.msra.mxu0 0.0
    %1098 = vmatpush.msra.mxu0 0.0
    %1099 = vmatpush.msra.mxu0 0.0
    %1100 = vmatpush.msra.mxu0 %v145
    %1101 = vmatpush.msra.mxu0 %v144
    %1102 = vmatpush.msra.mxu0 %v143
    %1103 = vmatpush.msra.mxu0 %v142
    %1104 = vmatmul.f32.gmra.mxu0 %v1086
    %v1105 = vpop.f32.mrf.mxu0
    %v1106 = vadd.f32 0.0, %v1105
    %1107 = vdwg.mxu0
    %v1109 = vrot.slane %v1106, 1
    %v1110 = vrot.slane %v1106, 2
    %v1113 = vadd.f32 %v137, %v1109
    %v1114 = vadd.f32 %v140, %v1110
    %v1115 = vxor.u32 %v1113, 2147483648
    %v1116 = vxor.u32 %v1114, 2147483648
    %v1117 = vmul.f32 %v1115, 1.442695
    %v1118 = vpow.pop %v1117
    %v1119 = vmul.f32 %v1116, 1.442695
    %v1120 = vpow.pop %v1119
    %v1121 = vadd.f32 %v1118, 1.0
    %v1122 = vadd.f32 %v1120, 1.0
    %v1123 = vrcp.pop %v1121
    %v1124 = vmul.f32 %v1121, %v1123
    %v1125 = vsub.f32 1.0, %v1124
    %v1126 = vmul.f32 %v1123, %v1125
    %v1127 = vadd.f32 %v1123, %v1126
    %vm1128 = vweird.f32 %v1121
    %vm1129 = vweird.f32 %v1123
    %vm1130 = vmor %vm1128, %vm1129
    %v1131 = vsel %vm1130, %v1123, %v1127
    %v1132 = vand.u32 2147483647, %v1121
    %vm1133 = vcmp.eq.f32.partialorder %v1132, 8.507059e+37
    %v1134 = vand.u32 %v1121, 2147483648
    %v1135 = vor.u32 1.1754944e-38, %v1134
    %v1136 = vsel %vm1133, %v1135, %v1131
    %v1137 = vmul.f32 1.0, %v1136
    %v1138 = vrcp.pop %v1122
    %v1139 = vmul.f32 %v1122, %v1138
    %v1140 = vsub.f32 1.0, %v1139
    %v1141 = vmul.f32 %v1138, %v1140
    %v1142 = vadd.f32 %v1138, %v1141
    %vm1143 = vweird.f32 %v1122
    %vm1144 = vweird.f32 %v1138
    %vm1145 = vmor %vm1143, %vm1144
    %v1146 = vsel %vm1145, %v1138, %v1142
    %v1147 = vand.u32 2147483647, %v1122
    %vm1148 = vcmp.eq.f32.partialorder %v1147, 8.507059e+37
    %v1149 = vand.u32 %v1122, 2147483648
    %v1150 = vor.u32 1.1754944e-38, %v1149
    %v1151 = vsel %vm1148, %v1150, %v1146
    %v1152 = vmul.f32 1.0, %v1151
    %v1153 = vmul.f32 %v1137, 2.0
    %v1154 = vmul.f32 %v1152, 2.0
    %v1155 = vsub.f32 %v1153, 1.0
    %v1156 = vsub.f32 %v1154, 1.0
    %v1159 = vrot.slane %v1048, 7
    %v1160 = vrot.slane %v1049, 7
    %v1163 = vmul.f32 %v1137, %v1159
    %v1164 = vmul.f32 %v1152, %v1160
    %1167 = vrot.lane.b32.xlu0 %v1155, 64
    %v1168 = vpop.permute.xlu0 %1167
    %1169 = vrot.lane.b32.xlu0 %v1156, 64
    %v1170 = vpop.permute.xlu0 %1169
    %v1173 = vmul.f32 %v1137, %v1168
    %v1174 = vmul.f32 %v1152, %v1170
    %1177 = vrot.lane.b32.xlu0 %v1173, 32
    %v1178 = vpop.permute.xlu0 %1177
    %1179 = vrot.lane.b32.xlu0 %v1174, 32
    %v1180 = vpop.permute.xlu0 %1179
    %v1183 = vadd.f32 %v1163, %v1178
    %v1184 = vadd.f32 %v1164, %v1180
    %v1185 = vtanh.pop %v1183
    %v1186 = vtanh.pop %v1184
    %1189 = vrot.lane.b32.xlu0 %v1185, 64
    %v1190 = vpop.permute.xlu0 %1189
    %1191 = vrot.lane.b32.xlu0 %v1186, 64
    %v1192 = vpop.permute.xlu0 %1191
    %v1195 = vmul.f32 %v1137, %v1190
    %v1196 = vmul.f32 %v1152, %v1192
    %1199 = vst.sshfl [vmem:[#allocation1] sm:$0xff pattern:$0x73625140] %v1195
    %s1200 = scalar_lea.vmem [#allocation1], 3
    %v1201 = vld [vmem:[%s1200] ss:$4 sm:$0xff]
    %1202 = vst.sshfl [vmem:[#allocation1 + $0x20] sm:$0xff pattern:$0x73625140] %v1196
    %s1203 = scalar_lea.vmem [#allocation1], 35
    %v1204 = vld [vmem:[%s1203] ss:$4 sm:$0xff]
    %v1205 = vrot.slane %v1201, 1
    %v1206 = vsel %vm263, %v1205, %v1205
    %v1207 = vsel %vm265, %v1205, %v1206
    %v1208 = vsel %vm268, %v1204, %v1207
    %v1209 = vsel %vm270, %v1204, %v1208
    %v1210 = vsel %vm272, %v1204, %v1209
    %v1211 = vsel %vm274, %v1204, %v1210
    %1213 = vst.msk [vmem:[#allocation11 + $0x2] sm:$0x3] %vm674, %v1211
    %v1214 = vrot.slane %v1196, 7
    %1215 = vrot.lane.b32.xlu0 %v1195, 32
    %v1216 = vpop.permute.xlu0 %1215
    %1217 = vrot.lane.b32.xlu0 %v1214, 32
    %v1218 = vpop.permute.xlu0 %1217
    %vm1221 = vcmask 261127
    %1222 = vst.msk [vmem:[#allocation12 - $0x7] sm:$0x80] %vm1221, %v1216
    %vm1223 = vcmask 253952
    %1224 = vst.msk [vmem:[#allocation12 + $0x1] sm:$0x1] %vm1223, %v1218
    %v1227 = vrot.slane %v1184, 7
    %1228 = vrot.lane.b32.xlu0 %v1183, 96
    %v1229 = vpop.permute.xlu0 %1228
    %1230 = vrot.lane.b32.xlu0 %v1227, 96
    %v1231 = vpop.permute.xlu0 %1230
    %1234 = vst.msk [vmem:[#allocation14 - $0x7] sm:$0x80] %vm1221, %v1229
    %1235 = vst.msk [vmem:[#allocation14 + $0x1] sm:$0x1] %vm1223, %v1231
    // Predicated region
    $region46: #{tpu_custom_call.1} parent=1 // pred_check
      _
    $region47: #{tpu_custom_call.1} parent=1 // pred_check_branch
      %1237 = sbr.rel (0) target = $region49
    $region48: #{tpu_custom_call.1} parent=1 // pred_region
      %1239 = vsyncadd [#allocation4], 0
      %s1241 = sshll.u32 [#allocation11], 4
      %s1242 = int_to_ptr.vmem [resolvable:$true] %s1241
      %s1243 = sshll.u32 %s6, 4
      %s1244 = int_to_ptr.hbm [resolvable:$true] %s1243
      %1246 = dma.vmem_to_hbm [thread:$0]  %s1242, 64, %s1244, [#allocation4]
    $region49: #{tpu_custom_call.1} parent=1 // pred_fallthru
      _
    // Predicated region
    $region50: #{tpu_custom_call.1} parent=1 // pred_check
      _
    $region51: #{tpu_custom_call.1} parent=1 // pred_check_branch
      %1248 = sbr.rel (0) target = $region53
    $region52: #{tpu_custom_call.1} parent=1 // pred_region
      %1250 = vsyncadd [#allocation13], 0
      %s1252 = sshll.u32 [#allocation12], 4
      %s1253 = int_to_ptr.vmem [resolvable:$true] %s1252
      %s1254 = sshll.u32 %s7, 4
      %s1255 = int_to_ptr.hbm [resolvable:$true] %s1254
      %1257 = dma.vmem_to_hbm [thread:$0]  %s1253, 32, %s1255, [#allocation13]
    $region53: #{tpu_custom_call.1} parent=1 // pred_fallthru
      _
    // Predicated region
    $region54: #{tpu_custom_call.1} parent=1 // pred_check
      _
    $region55: #{tpu_custom_call.1} parent=1 // pred_check_branch
      %1259 = sbr.rel (0) target = $region57
    $region56: #{tpu_custom_call.1} parent=1 // pred_region
      %1261 = vsyncadd [#allocation13], 0
      %s1263 = sshll.u32 [#allocation14], 4
      %s1264 = int_to_ptr.vmem [resolvable:$true] %s1263
      %s1265 = sshll.u32 %s8, 4
      %s1266 = int_to_ptr.hbm [resolvable:$true] %s1265
      %1268 = dma.vmem_to_hbm [thread:$0]  %s1264, 32, %s1266, [#allocation13]
    $region57: #{tpu_custom_call.1} parent=1 // pred_fallthru
      _
    // Predicated region
    $region58: #{tpu_custom_call.1} parent=1 // pred_check
      _
    $region59: #{tpu_custom_call.1} parent=1 // pred_check_branch
      %1270 = sbr.rel (0) target = $region61
    $region60: #{tpu_custom_call.1} parent=1 // pred_region
      %1272 = dma.done [#allocation4], 64
    $region61: #{tpu_custom_call.1} parent=1 // pred_fallthru
      _
    // Predicated region
    $region62: #{tpu_custom_call.1} parent=1 // pred_check
      _
    $region63: #{tpu_custom_call.1} parent=1 // pred_check_branch
      %1274 = sbr.rel (0) target = $region65
    $region64: #{tpu_custom_call.1} parent=1 // pred_region
      %1276 = dma.done [#allocation13], 32
    $region65: #{tpu_custom_call.1} parent=1 // pred_fallthru
      _
    // Predicated region
    $region66: #{tpu_custom_call.1} parent=1 // pred_check
      _
    $region67: #{tpu_custom_call.1} parent=1 // pred_check_branch
      %1278 = sbr.rel (0) target = $region69
    $region68: #{tpu_custom_call.1} parent=1 // pred_region
      %1280 = dma.done [#allocation13], 32
    $region69: #{tpu_custom_call.1} parent=1 // pred_fallthru
      _
    %1281 = vsyncpa [#allocation3], 1
    %1282 = vsyncpa [#allocation6], 1
    %1283 = vsyncpa [#allocation9], 1
    %1284 = vsyncpa [#allocation4], 1
    %1285 = vsyncpa [#allocation13], 1

</llo_original>
